<compile_context>
chip_gen: v5e
topology: v5e:2x2
jax: 0.10.0
libtpu: 0.0.40
codegen_flags: <defaults>
</compile_context>

<pallas_src>
import functools
from types import SimpleNamespace

import jax
import jax.numpy as jnp
from jax.experimental import pallas as pl
from jax.experimental.pallas import tpu as pltpu


# ----------------------------- fused Net kernel -------------------------------
def _net_fused_kernel(*refs, num_layers, time_step, batch_pad, hidden):
    """Fused multi-layer LSTM + Linear head.

    refs layout (all whole-array VMEM):
      inputs : x2d (T*Bp, D), h0 (L, Bp, H), c0 (L, Bp, H),
               [wih_t (Din_l, 4H), whh_t (H, 4H), b (1, 4H)] * L   (g-cols pre-scaled x2),
               w_lin_pad (H, O_pad), b_lin_pad (1, O_pad)
      outputs: pred_pad (Bp, O_pad), h_n (L, Bp, H), c_n (L, Bp, H)
      scratch: seq (T*Bp, H) f32   (inter-layer hidden sequence)
    """
    L, T, B, H = num_layers, time_step, batch_pad, hidden

    x2d_ref, h0_ref, c0_ref = refs[0], refs[1], refs[2]
    p = 3
    layer_refs = []
    for _ in range(L):
        layer_refs.append((refs[p], refs[p + 1], refs[p + 2]))
        p += 3
    wlin_ref, blin_ref = refs[p], refs[p + 1]
    p += 2
    pred_ref, hn_ref, cn_ref = refs[p], refs[p + 1], refs[p + 2]
    p += 3
    seq_sc = refs[p]

    h = None
    c = None
    for l in range(L):
        wih_ref, whh_ref, b_ref = layer_refs[l]

        # Hoisted input projection for ALL timesteps of this layer:
        # one well-filled (T*Bp, Din) x (Din, 4H) MXU matmul instead of T tiny
        # ones.  Kept as a value (8 vregs) -> no VMEM store/reload round trip.
        seq_in = x2d_ref[...] if l == 0 else seq_sc[...]
        xg = (jnp.dot(seq_in, wih_ref[...],
                      preferred_element_type=jnp.float32)
              + b_ref[...])                                        # (T*Bp, 4H)

        # Hoist the recurrent weight out of the unrolled time loop
        # (don't rely on Mosaic CSE'ing the ref read).
        whh = whh_ref[...]                                         # (H, 4H)

        h = h0_ref[l]  # (Bp, H), f32
        c = c0_ref[l]  # (Bp, H), f32

        # Statically unrolled time recurrence (T is small and known).
        for t in range(T):
            # Bp = 8 -> these static slices are (8,128)-tile-aligned (unmasked).
            gates = xg[t * B:(t + 1) * B, :] + jnp.dot(
                h, whh, preferred_element_type=jnp.float32)        # (Bp, 4H)

            # Single full-width sigmoid; PyTorch gate order [i, f, g, o].
            # g-gate columns were pre-scaled by 2, so tanh(x) = 2*sigmoid(2x)-1.
            sig = jax.nn.sigmoid(gates)
            i_g = sig[:, 0 * H:1 * H]
            f_g = sig[:, 1 * H:2 * H]
            g_g = 2.0 * sig[:, 2 * H:3 * H] - 1.0
            o_g = sig[:, 3 * H:4 * H]

            c = f_g * c + i_g * g_g
            h = o_g * jnp.tanh(c)

            # Only non-final layers need their full hidden sequence
            # (as next-layer input); it stays in VMEM scratch.
            if l < L - 1:
                seq_sc[t * B:(t + 1) * B, :] = h

        hn_ref[l] = h.astype(hn_ref.dtype)
        cn_ref[l] = c.astype(cn_ref.dtype)

    # Fused Linear head on the last layer's final hidden state.
    # Output is a lane-dense 128-wide padded slab (unmasked stores);
    # the wrapper slices back to out_size.
    pred_ref[...] = (jnp.dot(h, wlin_ref[...],
                             preferred_element_type=jnp.float32)
                     + blin_ref[...]).astype(pred_ref.dtype)


# ------------------------------- Net forward ----------------------------------
def net_forward(params, config, x, hidden=None):
    B, T = config.batch_size, config.time_step
    D, H, L = config.input_size, config.hidden_size, config.lstm_layers
    O = config.out_size

    # Pad batch to a f32 sublane multiple (8) -> all per-timestep slices and
    # hn/cn/pred stores in the kernel are tile-aligned, unmasked accesses.
    B_pad = max(8, ((B + 7) // 8) * 8)
    # Pad the Linear head to a lane-dense (multiple of 128) output width.
    O_pad = ((O + 127) // 128) * 128

    x = x.reshape(B, T, D)                   # == x.view(batch, time_step, input_size)
    x_tm = jnp.transpose(x, (1, 0, 2))       # time-major (T, B, D)
    x_tm = jnp.pad(x_tm, ((0, 0), (0, B_pad - B), (0, 0)))
    x2d = x_tm.reshape(T * B_pad, D)

    if hidden is None:
        h0 = jnp.zeros((L, B_pad, H), jnp.float32)
        c0 = jnp.zeros((L, B_pad, H), jnp.float32)
    else:
        h0, c0 = hidden
        h0 = jnp.pad(h0, ((0, 0), (0, B_pad - h0.shape[1]), (0, 0)))
        c0 = jnp.pad(c0, ((0, 0), (0, B_pad - c0.shape[1]), (0, 0)))

    w_pad = jnp.pad(params["linear"]["w_t"], ((0, 0), (0, O_pad - O)))
    b_pad = jnp.pad(params["linear"]["b"], ((0, 0), (0, O_pad - O)))

    inputs = [x2d, h0, c0]
    for l in range(L):
        p = params["lstm"][l]
        # Pre-scale the g-gate (cell-candidate) columns by 2 so the kernel can
        # use tanh(x) = 2*sigmoid(2x) - 1 with ONE full-width sigmoid per step.
        wih = p["wih_t"].at[:, 2 * H:3 * H].multiply(2.0)
        whh = p["whh_t"].at[:, 2 * H:3 * H].multiply(2.0)
        b = p["b"].at[:, 2 * H:3 * H].multiply(2.0)
        inputs += [wih, whh, b]
    inputs += [w_pad, b_pad]

    kernel = functools.partial(_net_fused_kernel, num_layers=L, time_step=T,
                               batch_pad=B_pad, hidden=H)
    vmem_spec = pl.BlockSpec(memory_space=pltpu.MemorySpace.VMEM)

    out_shapes = (
        jax.ShapeDtypeStruct((B_pad, O_pad), jnp.float32),   # padded prediction
        jax.ShapeDtypeStruct((L, B_pad, H), jnp.float32),    # h_n (padded batch)
        jax.ShapeDtypeStruct((L, B_pad, H), jnp.float32),    # c_n (padded batch)
    )

    pred_pad, hn_pad, cn_pad = pl.pallas_call(
        kernel,
        out_shape=out_shapes,
        in_specs=[vmem_spec] * len(inputs),
        out_specs=(vmem_spec, vmem_spec, vmem_spec),
        scratch_shapes=[
            pltpu.VMEM((T * B_pad, H), jnp.float32),   # inter-layer hidden sequence
        ],
    )(*inputs)

    # TODO(synk): PyTorch applies dropout between LSTM layers only in training
    # mode; the eval-mode forward is identity, so it is omitted.

    # Slice the batch/lane padding back off.
    pred = pred_pad[:B, :O]
    h_n = hn_pad[:, :B, :]
    c_n = cn_pad[:, :B, :]
    return pred, (h_n, c_n)


# --------------------------- deterministic params ------------------------------
def init_params(key, config):
    D, H = config.input_size, config.hidden_size
    L, O = config.lstm_layers, config.out_size
    bound = 1.0 / float(jnp.sqrt(jnp.float32(H)))
    params = {"lstm": []}
    for l in range(L):
        in_dim = D if l == 0 else H
        key, k1, k2, k3, k4 = jax.random.split(key, 5)
        wih = jax.random.uniform(k1, (4 * H, in_dim), jnp.float32, -bound, bound)
        whh = jax.random.uniform(k2, (4 * H, H), jnp.float32, -bound, bound)
        bih = jax.random.uniform(k3, (4 * H,), jnp.float32, -bound, bound)
        bhh = jax.random.uniform(k4, (4 * H,), jnp.float32, -bound, bound)
        params["lstm"].append({
            "wih_t": wih.T,                       # (in_dim, 4H)
            "whh_t": whh.T,                       # (H, 4H)
            "b": (bih + bhh).reshape(1, 4 * H),   # (1, 4H)
        })
    key, k5, k6 = jax.random.split(key, 3)
    w = jax.random.uniform(k5, (O, H), jnp.float32, -bound, bound)
    b = jax.random.uniform(k6, (O,), jnp.float32, -bound, bound)
    params["linear"] = {"w_t": w.T, "b": b.reshape(1, O)}
    return params


# ------------------------------ pure-JAX reference -----------------------------
def ref_forward(params, config, x):
    B, T = config.batch_size, config.time_step
    D, H, L = config.input_size, config.hidden_size, config.lstm_layers
    x = x.reshape(B, T, D)
    layer_in = jnp.transpose(x, (1, 0, 2))
    hn_list, cn_list = [], []
    for l in range(L):
        p = params["lstm"][l]

        def step(carry, x_t, p=p):
            h, c = carry
            gates = x_t @ p["wih_t"] + h @ p["whh_t"] + p["b"]
            i = jax.nn.sigmoid(gates[:, 0 * H:1 * H])
            f = jax.nn.sigmoid(gates[:, 1 * H:2 * H])
            g = jnp.tanh(gates[:, 2 * H:3 * H])
            o = jax.nn.sigmoid(gates[:, 3 * H:4 * H])
            c = f * c + i * g
            h = o * jnp.tanh(c)
            return (h, c), h

        h0 = jnp.zeros((B, H), jnp.float32)
        c0 = jnp.zeros((B, H), jnp.float32)
        (hn, cn), out = jax.lax.scan(step, (h0, c0), layer_in)
        hn_list.append(hn)
        cn_list.append(cn)
        layer_in = out
    h_last = layer_in[-1]
    pred = h_last @ params["linear"]["w_t"] + params["linear"]["b"]
    return pred, (jnp.stack(hn_list), jnp.stack(cn_list))


# ------------------------------------ main -------------------------------------
if __name__ == "__main__":
    config = SimpleNamespace(batch_size=2, time_step=8, input_size=16,
                             hidden_size=32, lstm_layers=2, out_size=4,
                             dropout_rate=0.0)
    key = jax.random.PRNGKey(0)
    kp, kx = jax.random.split(key)
    params = init_params(kp, config)
    x = jax.random.normal(
        kx, (config.batch_size, config.time_step, config.input_size),
        jnp.float32)

    pred, (h_n, c_n) = net_forward(params, config, x)
    jax.block_until_ready((pred, h_n, c_n))

    pred_ref, (hn_ref, cn_ref) = ref_forward(params, config, x)
    assert pred.shape == (config.batch_size, config.out_size)
    assert h_n.shape == (config.lstm_layers, config.batch_size, config.hidden_size)
    assert c_n.shape == (config.lstm_layers, config.batch_size, config.hidden_size)
    assert jnp.allclose(pred, pred_ref, atol=1e-4), "pred mismatch vs reference"
    assert jnp.allclose(h_n, hn_ref, atol=1e-4), "h_n mismatch vs reference"
    assert jnp.allclose(c_n, cn_ref, atol=1e-4), "c_n mismatch vs reference"

    print("KERNEL_OK")
</pallas_src>

<mosaic_0001>
module attributes {stable_mosaic.version = 11 : i64} {
  func.func @_net_fused_kernel(%arg0: memref<64x16xf32, #tpu.memory_space<vmem>>, %arg1: memref<2x8x32xf32, #tpu.memory_space<vmem>>, %arg2: memref<2x8x32xf32, #tpu.memory_space<vmem>>, %arg3: memref<16x128xf32, #tpu.memory_space<vmem>>, %arg4: memref<32x128xf32, #tpu.memory_space<vmem>>, %arg5: memref<1x128xf32, #tpu.memory_space<vmem>>, %arg6: memref<32x128xf32, #tpu.memory_space<vmem>>, %arg7: memref<32x128xf32, #tpu.memory_space<vmem>>, %arg8: memref<1x128xf32, #tpu.memory_space<vmem>>, %arg9: memref<32x128xf32, #tpu.memory_space<vmem>>, %arg10: memref<1x128xf32, #tpu.memory_space<vmem>>, %arg11: memref<8x128xf32, #tpu.memory_space<vmem>>, %arg12: memref<2x8x32xf32, #tpu.memory_space<vmem>>, %arg13: memref<2x8x32xf32, #tpu.memory_space<vmem>>, %arg14: memref<64x32xf32, #tpu.memory_space<vmem>>) attributes {dimension_semantics = [], scalar_prefetch = 0 : i64, scratch_operands = 1 : i64, tpu.core_type = #tpu.core_type<tc>} {
    %c0 = arith.constant 0 : index
    %c0_0 = arith.constant 0 : index
    %0 = vector.load %arg0[%c0, %c0_0] : memref<64x16xf32, #tpu.memory_space<vmem>>, vector<64x16xf32>
    %c0_1 = arith.constant 0 : index
    %c0_2 = arith.constant 0 : index
    %1 = vector.load %arg3[%c0_1, %c0_2] : memref<16x128xf32, #tpu.memory_space<vmem>>, vector<16x128xf32>
    %cst = arith.constant dense<0.000000e+00> : vector<64x128xf32>
    %2 = tpu.matmul %0, %1, %cst {dimension_numbers = #tpu.dot_dimension_numbers<[1], [0], [0], [1], [0, 0, 1, 1], [], []>} : vector<64x16xf32>, vector<16x128xf32>, vector<64x128xf32> -> vector<64x128xf32>
    %c0_3 = arith.constant 0 : index
    %c0_4 = arith.constant 0 : index
    %3 = vector.load %arg5[%c0_3, %c0_4] : memref<1x128xf32, #tpu.memory_space<vmem>>, vector<1x128xf32>
    %4 = vector.broadcast %3 : vector<1x128xf32> to vector<64x128xf32>
    %5 = arith.addf %2, %4 : vector<64x128xf32>
    %c0_5 = arith.constant 0 : index
    %c0_6 = arith.constant 0 : index
    %6 = vector.load %arg4[%c0_5, %c0_6] : memref<32x128xf32, #tpu.memory_space<vmem>>, vector<32x128xf32>
    %c0_7 = arith.constant 0 : index
    %c0_8 = arith.constant 0 : index
    %c0_9 = arith.constant 0 : index
    %7 = vector.load %arg1[%c0_7, %c0_8, %c0_9] : memref<2x8x32xf32, #tpu.memory_space<vmem>>, vector<1x8x32xf32>
    %8 = vector.shape_cast %7 : vector<1x8x32xf32> to vector<8x32xf32>
    %c0_10 = arith.constant 0 : index
    %c0_11 = arith.constant 0 : index
    %c0_12 = arith.constant 0 : index
    %9 = vector.load %arg2[%c0_10, %c0_11, %c0_12] : memref<2x8x32xf32, #tpu.memory_space<vmem>>, vector<1x8x32xf32>
    %10 = vector.shape_cast %9 : vector<1x8x32xf32> to vector<8x32xf32>
    %11 = vector.extract_strided_slice %5 {offsets = [0, 0], sizes = [8, 128], strides = [1, 1]} : vector<64x128xf32> to vector<8x128xf32>
    %cst_13 = arith.constant dense<0.000000e+00> : vector<8x128xf32>
    %12 = tpu.matmul %8, %6, %cst_13 {dimension_numbers = #tpu.dot_dimension_numbers<[1], [0], [0], [1], [0, 0, 1, 1], [], []>} : vector<8x32xf32>, vector<32x128xf32>, vector<8x128xf32> -> vector<8x128xf32>
    %13 = arith.addf %11, %12 : vector<8x128xf32>
    %14 = arith.negf %13 : vector<8x128xf32>
    %15 = math.exp %14 : vector<8x128xf32>
    %cst_14 = arith.constant 1.000000e+00 : f32
    %16 = vector.broadcast %cst_14 : f32 to vector<8x128xf32>
    %17 = arith.addf %16, %15 : vector<8x128xf32>
    %18 = arith.divf %16, %17 : vector<8x128xf32>
    %19 = vector.extract_strided_slice %18 {offsets = [0, 0], sizes = [8, 32], strides = [1, 1]} : vector<8x128xf32> to vector<8x32xf32>
    %20 = vector.extract_strided_slice %18 {offsets = [0, 32], sizes = [8, 32], strides = [1, 1]} : vector<8x128xf32> to vector<8x32xf32>
    %21 = vector.extract_strided_slice %18 {offsets = [0, 64], sizes = [8, 32], strides = [1, 1]} : vector<8x128xf32> to vector<8x32xf32>
    %cst_15 = arith.constant 2.000000e+00 : f32
    %22 = vector.broadcast %cst_15 : f32 to vector<8x32xf32>
    %23 = arith.mulf %22, %21 : vector<8x32xf32>
    %cst_16 = arith.constant 1.000000e+00 : f32
    %24 = vector.broadcast %cst_16 : f32 to vector<8x32xf32>
    %25 = arith.subf %23, %24 : vector<8x32xf32>
    %26 = vector.extract_strided_slice %18 {offsets = [0, 96], sizes = [8, 32], strides = [1, 1]} : vector<8x128xf32> to vector<8x32xf32>
    %27 = arith.mulf %20, %10 : vector<8x32xf32>
    %28 = arith.mulf %19, %25 : vector<8x32xf32>
    %29 = arith.addf %27, %28 : vector<8x32xf32>
    %30 = math.tanh %29 : vector<8x32xf32>
    %31 = arith.mulf %26, %30 : vector<8x32xf32>
    %c0_17 = arith.constant 0 : index
    %c0_18 = arith.constant 0 : index
    %32 = vector.load %arg14[%c0_17, %c0_18] : memref<64x32xf32, #tpu.memory_space<vmem>>, vector<8x32xf32>
    tpu.vector_store %arg14[%c0_17, %c0_18], %31 {strides = array<i32>} : memref<64x32xf32, #tpu.memory_space<vmem>>, vector<8x32xf32>,
    %33 = vector.extract_strided_slice %5 {offsets = [8, 0], sizes = [8, 128], strides = [1, 1]} : vector<64x128xf32> to vector<8x128xf32>
    %cst_19 = arith.constant dense<0.000000e+00> : vector<8x128xf32>
    %34 = tpu.matmul %31, %6, %cst_19 {dimension_numbers = #tpu.dot_dimension_numbers<[1], [0], [0], [1], [0, 0, 1, 1], [], []>} : vector<8x32xf32>, vector<32x128xf32>, vector<8x128xf32> -> vector<8x128xf32>
    %35 = arith.addf %33, %34 : vector<8x128xf32>
    %36 = arith.negf %35 : vector<8x128xf32>
    %37 = math.exp %36 : vector<8x128xf32>
    %cst_20 = arith.constant 1.000000e+00 : f32
    %38 = vector.broadcast %cst_20 : f32 to vector<8x128xf32>
    %39 = arith.addf %38, %37 : vector<8x128xf32>
    %40 = arith.divf %38, %39 : vector<8x128xf32>
    %41 = vector.extract_strided_slice %40 {offsets = [0, 0], sizes = [8, 32], strides = [1, 1]} : vector<8x128xf32> to vector<8x32xf32>
    %42 = vector.extract_strided_slice %40 {offsets = [0, 32], sizes = [8, 32], strides = [1, 1]} : vector<8x128xf32> to vector<8x32xf32>
    %43 = vector.extract_strided_slice %40 {offsets = [0, 64], sizes = [8, 32], strides = [1, 1]} : vector<8x128xf32> to vector<8x32xf32>
    %cst_21 = arith.constant 2.000000e+00 : f32
    %44 = vector.broadcast %cst_21 : f32 to vector<8x32xf32>
    %45 = arith.mulf %44, %43 : vector<8x32xf32>
    %cst_22 = arith.constant 1.000000e+00 : f32
    %46 = vector.broadcast %cst_22 : f32 to vector<8x32xf32>
    %47 = arith.subf %45, %46 : vector<8x32xf32>
    %48 = vector.extract_strided_slice %40 {offsets = [0, 96], sizes = [8, 32], strides = [1, 1]} : vector<8x128xf32> to vector<8x32xf32>
    %49 = arith.mulf %42, %29 : vector<8x32xf32>
    %50 = arith.mulf %41, %47 : vector<8x32xf32>
    %51 = arith.addf %49, %50 : vector<8x32xf32>
    %52 = math.tanh %51 : vector<8x32xf32>
    %53 = arith.mulf %48, %52 : vector<8x32xf32>
    %c8 = arith.constant 8 : index
    %c0_23 = arith.constant 0 : index
    %54 = vector.load %arg14[%c8, %c0_23] : memref<64x32xf32, #tpu.memory_space<vmem>>, vector<8x32xf32>
    tpu.vector_store %arg14[%c8, %c0_23], %53 {strides = array<i32>} : memref<64x32xf32, #tpu.memory_space<vmem>>, vector<8x32xf32>,
    %55 = vector.extract_strided_slice %5 {offsets = [16, 0], sizes = [8, 128], strides = [1, 1]} : vector<64x128xf32> to vector<8x128xf32>
    %cst_24 = arith.constant dense<0.000000e+00> : vector<8x128xf32>
    %56 = tpu.matmul %53, %6, %cst_24 {dimension_numbers = #tpu.dot_dimension_numbers<[1], [0], [0], [1], [0, 0, 1, 1], [], []>} : vector<8x32xf32>, vector<32x128xf32>, vector<8x128xf32> -> vector<8x128xf32>
    %57 = arith.addf %55, %56 : vector<8x128xf32>
    %58 = arith.negf %57 : vector<8x128xf32>
    %59 = math.exp %58 : vector<8x128xf32>
    %cst_25 = arith.constant 1.000000e+00 : f32
    %60 = vector.broadcast %cst_25 : f32 to vector<8x128xf32>
    %61 = arith.addf %60, %59 : vector<8x128xf32>
    %62 = arith.divf %60, %61 : vector<8x128xf32>
    %63 = vector.extract_strided_slice %62 {offsets = [0, 0], sizes = [8, 32], strides = [1, 1]} : vector<8x128xf32> to vector<8x32xf32>
    %64 = vector.extract_strided_slice %62 {offsets = [0, 32], sizes = [8, 32], strides = [1, 1]} : vector<8x128xf32> to vector<8x32xf32>
    %65 = vector.extract_strided_slice %62 {offsets = [0, 64], sizes = [8, 32], strides = [1, 1]} : vector<8x128xf32> to vector<8x32xf32>
    %cst_26 = arith.constant 2.000000e+00 : f32
    %66 = vector.broadcast %cst_26 : f32 to vector<8x32xf32>
    %67 = arith.mulf %66, %65 : vector<8x32xf32>
    %cst_27 = arith.constant 1.000000e+00 : f32
    %68 = vector.broadcast %cst_27 : f32 to vector<8x32xf32>
    %69 = arith.subf %67, %68 : vector<8x32xf32>
    %70 = vector.extract_strided_slice %62 {offsets = [0, 96], sizes = [8, 32], strides = [1, 1]} : vector<8x128xf32> to vector<8x32xf32>
    %71 = arith.mulf %64, %51 : vector<8x32xf32>
    %72 = arith.mulf %63, %69 : vector<8x32xf32>
    %73 = arith.addf %71, %72 : vector<8x32xf32>
    %74 = math.tanh %73 : vector<8x32xf32>
    %75 = arith.mulf %70, %74 : vector<8x32xf32>
    %c16 = arith.constant 16 : index
    %c0_28 = arith.constant 0 : index
    %76 = vector.load %arg14[%c16, %c0_28] : memref<64x32xf32, #tpu.memory_space<vmem>>, vector<8x32xf32>
    tpu.vector_store %arg14[%c16, %c0_28], %75 {strides = array<i32>} : memref<64x32xf32, #tpu.memory_space<vmem>>, vector<8x32xf32>,
    %77 = vector.extract_strided_slice %5 {offsets = [24, 0], sizes = [8, 128], strides = [1, 1]} : vector<64x128xf32> to vector<8x128xf32>
    %cst_29 = arith.constant dense<0.000000e+00> : vector<8x128xf32>
    %78 = tpu.matmul %75, %6, %cst_29 {dimension_numbers = #tpu.dot_dimension_numbers<[1], [0], [0], [1], [0, 0, 1, 1], [], []>} : vector<8x32xf32>, vector<32x128xf32>, vector<8x128xf32> -> vector<8x128xf32>
    %79 = arith.addf %77, %78 : vector<8x128xf32>
    %80 = arith.negf %79 : vector<8x128xf32>
    %81 = math.exp %80 : vector<8x128xf32>
    %cst_30 = arith.constant 1.000000e+00 : f32
    %82 = vector.broadcast %cst_30 : f32 to vector<8x128xf32>
    %83 = arith.addf %82, %81 : vector<8x128xf32>
    %84 = arith.divf %82, %83 : vector<8x128xf32>
    %85 = vector.extract_strided_slice %84 {offsets = [0, 0], sizes = [8, 32], strides = [1, 1]} : vector<8x128xf32> to vector<8x32xf32>
    %86 = vector.extract_strided_slice %84 {offsets = [0, 32], sizes = [8, 32], strides = [1, 1]} : vector<8x128xf32> to vector<8x32xf32>
    %87 = vector.extract_strided_slice %84 {offsets = [0, 64], sizes = [8, 32], strides = [1, 1]} : vector<8x128xf32> to vector<8x32xf32>
    %cst_31 = arith.constant 2.000000e+00 : f32
    %88 = vector.broadcast %cst_31 : f32 to vector<8x32xf32>
    %89 = arith.mulf %88, %87 : vector<8x32xf32>
    %cst_32 = arith.constant 1.000000e+00 : f32
    %90 = vector.broadcast %cst_32 : f32 to vector<8x32xf32>
    %91 = arith.subf %89, %90 : vector<8x32xf32>
    %92 = vector.extract_strided_slice %84 {offsets = [0, 96], sizes = [8, 32], strides = [1, 1]} : vector<8x128xf32> to vector<8x32xf32>
    %93 = arith.mulf %86, %73 : vector<8x32xf32>
    %94 = arith.mulf %85, %91 : vector<8x32xf32>
    %95 = arith.addf %93, %94 : vector<8x32xf32>
    %96 = math.tanh %95 : vector<8x32xf32>
    %97 = arith.mulf %92, %96 : vector<8x32xf32>
    %c24 = arith.constant 24 : index
    %c0_33 = arith.constant 0 : index
    %98 = vector.load %arg14[%c24, %c0_33] : memref<64x32xf32, #tpu.memory_space<vmem>>, vector<8x32xf32>
    tpu.vector_store %arg14[%c24, %c0_33], %97 {strides = array<i32>} : memref<64x32xf32, #tpu.memory_space<vmem>>, vector<8x32xf32>,
    %99 = vector.extract_strided_slice %5 {offsets = [32, 0], sizes = [8, 128], strides = [1, 1]} : vector<64x128xf32> to vector<8x128xf32>
    %cst_34 = arith.constant dense<0.000000e+00> : vector<8x128xf32>
    %100 = tpu.matmul %97, %6, %cst_34 {dimension_numbers = #tpu.dot_dimension_numbers<[1], [0], [0], [1], [0, 0, 1, 1], [], []>} : vector<8x32xf32>, vector<32x128xf32>, vector<8x128xf32> -> vector<8x128xf32>
    %101 = arith.addf %99, %100 : vector<8x128xf32>
    %102 = arith.negf %101 : vector<8x128xf32>
    %103 = math.exp %102 : vector<8x128xf32>
    %cst_35 = arith.constant 1.000000e+00 : f32
    %104 = vector.broadcast %cst_35 : f32 to vector<8x128xf32>
    %105 = arith.addf %104, %103 : vector<8x128xf32>
    %106 = arith.divf %104, %105 : vector<8x128xf32>
    %107 = vector.extract_strided_slice %106 {offsets = [0, 0], sizes = [8, 32], strides = [1, 1]} : vector<8x128xf32> to vector<8x32xf32>
    %108 = vector.extract_strided_slice %106 {offsets = [0, 32], sizes = [8, 32], strides = [1, 1]} : vector<8x128xf32> to vector<8x32xf32>
    %109 = vector.extract_strided_slice %106 {offsets = [0, 64], sizes = [8, 32], strides = [1, 1]} : vector<8x128xf32> to vector<8x32xf32>
    %cst_36 = arith.constant 2.000000e+00 : f32
    %110 = vector.broadcast %cst_36 : f32 to vector<8x32xf32>
    %111 = arith.mulf %110, %109 : vector<8x32xf32>
    %cst_37 = arith.constant 1.000000e+00 : f32
    %112 = vector.broadcast %cst_37 : f32 to vector<8x32xf32>
    %113 = arith.subf %111, %112 : vector<8x32xf32>
    %114 = vector.extract_strided_slice %106 {offsets = [0, 96], sizes = [8, 32], strides = [1, 1]} : vector<8x128xf32> to vector<8x32xf32>
    %115 = arith.mulf %108, %95 : vector<8x32xf32>
    %116 = arith.mulf %107, %113 : vector<8x32xf32>
    %117 = arith.addf %115, %116 : vector<8x32xf32>
    %118 = math.tanh %117 : vector<8x32xf32>
    %119 = arith.mulf %114, %118 : vector<8x32xf32>
    %c32 = arith.constant 32 : index
    %c0_38 = arith.constant 0 : index
    %120 = vector.load %arg14[%c32, %c0_38] : memref<64x32xf32, #tpu.memory_space<vmem>>, vector<8x32xf32>
    tpu.vector_store %arg14[%c32, %c0_38], %119 {strides = array<i32>} : memref<64x32xf32, #tpu.memory_space<vmem>>, vector<8x32xf32>,
    %121 = vector.extract_strided_slice %5 {offsets = [40, 0], sizes = [8, 128], strides = [1, 1]} : vector<64x128xf32> to vector<8x128xf32>
    %cst_39 = arith.constant dense<0.000000e+00> : vector<8x128xf32>
    %122 = tpu.matmul %119, %6, %cst_39 {dimension_numbers = #tpu.dot_dimension_numbers<[1], [0], [0], [1], [0, 0, 1, 1], [], []>} : vector<8x32xf32>, vector<32x128xf32>, vector<8x128xf32> -> vector<8x128xf32>
    %123 = arith.addf %121, %122 : vector<8x128xf32>
    %124 = arith.negf %123 : vector<8x128xf32>
    %125 = math.exp %124 : vector<8x128xf32>
    %cst_40 = arith.constant 1.000000e+00 : f32
    %126 = vector.broadcast %cst_40 : f32 to vector<8x128xf32>
    %127 = arith.addf %126, %125 : vector<8x128xf32>
    %128 = arith.divf %126, %127 : vector<8x128xf32>
    %129 = vector.extract_strided_slice %128 {offsets = [0, 0], sizes = [8, 32], strides = [1, 1]} : vector<8x128xf32> to vector<8x32xf32>
    %130 = vector.extract_strided_slice %128 {offsets = [0, 32], sizes = [8, 32], strides = [1, 1]} : vector<8x128xf32> to vector<8x32xf32>
    %131 = vector.extract_strided_slice %128 {offsets = [0, 64], sizes = [8, 32], strides = [1, 1]} : vector<8x128xf32> to vector<8x32xf32>
    %cst_41 = arith.constant 2.000000e+00 : f32
    %132 = vector.broadcast %cst_41 : f32 to vector<8x32xf32>
    %133 = arith.mulf %132, %131 : vector<8x32xf32>
    %cst_42 = arith.constant 1.000000e+00 : f32
    %134 = vector.broadcast %cst_42 : f32 to vector<8x32xf32>
    %135 = arith.subf %133, %134 : vector<8x32xf32>
    %136 = vector.extract_strided_slice %128 {offsets = [0, 96], sizes = [8, 32], strides = [1, 1]} : vector<8x128xf32> to vector<8x32xf32>
    %137 = arith.mulf %130, %117 : vector<8x32xf32>
    %138 = arith.mulf %129, %135 : vector<8x32xf32>
    %139 = arith.addf %137, %138 : vector<8x32xf32>
    %140 = math.tanh %139 : vector<8x32xf32>
    %141 = arith.mulf %136, %140 : vector<8x32xf32>
    %c40 = arith.constant 40 : index
    %c0_43 = arith.constant 0 : index
    %142 = vector.load %arg14[%c40, %c0_43] : memref<64x32xf32, #tpu.memory_space<vmem>>, vector<8x32xf32>
    tpu.vector_store %arg14[%c40, %c0_43], %141 {strides = array<i32>} : memref<64x32xf32, #tpu.memory_space<vmem>>, vector<8x32xf32>,
    %143 = vector.extract_strided_slice %5 {offsets = [48, 0], sizes = [8, 128], strides = [1, 1]} : vector<64x128xf32> to vector<8x128xf32>
    %cst_44 = arith.constant dense<0.000000e+00> : vector<8x128xf32>
    %144 = tpu.matmul %141, %6, %cst_44 {dimension_numbers = #tpu.dot_dimension_numbers<[1], [0], [0], [1], [0, 0, 1, 1], [], []>} : vector<8x32xf32>, vector<32x128xf32>, vector<8x128xf32> -> vector<8x128xf32>
    %145 = arith.addf %143, %144 : vector<8x128xf32>
    %146 = arith.negf %145 : vector<8x128xf32>
    %147 = math.exp %146 : vector<8x128xf32>
    %cst_45 = arith.constant 1.000000e+00 : f32
    %148 = vector.broadcast %cst_45 : f32 to vector<8x128xf32>
    %149 = arith.addf %148, %147 : vector<8x128xf32>
    %150 = arith.divf %148, %149 : vector<8x128xf32>
    %151 = vector.extract_strided_slice %150 {offsets = [0, 0], sizes = [8, 32], strides = [1, 1]} : vector<8x128xf32> to vector<8x32xf32>
    %152 = vector.extract_strided_slice %150 {offsets = [0, 32], sizes = [8, 32], strides = [1, 1]} : vector<8x128xf32> to vector<8x32xf32>
    %153 = vector.extract_strided_slice %150 {offsets = [0, 64], sizes = [8, 32], strides = [1, 1]} : vector<8x128xf32> to vector<8x32xf32>
    %cst_46 = arith.constant 2.000000e+00 : f32
    %154 = vector.broadcast %cst_46 : f32 to vector<8x32xf32>
    %155 = arith.mulf %154, %153 : vector<8x32xf32>
    %cst_47 = arith.constant 1.000000e+00 : f32
    %156 = vector.broadcast %cst_47 : f32 to vector<8x32xf32>
    %157 = arith.subf %155, %156 : vector<8x32xf32>
    %158 = vector.extract_strided_slice %150 {offsets = [0, 96], sizes = [8, 32], strides = [1, 1]} : vector<8x128xf32> to vector<8x32xf32>
    %159 = arith.mulf %152, %139 : vector<8x32xf32>
    %160 = arith.mulf %151, %157 : vector<8x32xf32>
    %161 = arith.addf %159, %160 : vector<8x32xf32>
    %162 = math.tanh %161 : vector<8x32xf32>
    %163 = arith.mulf %158, %162 : vector<8x32xf32>
    %c48 = arith.constant 48 : index
    %c0_48 = arith.constant 0 : index
    %164 = vector.load %arg14[%c48, %c0_48] : memref<64x32xf32, #tpu.memory_space<vmem>>, vector<8x32xf32>
    tpu.vector_store %arg14[%c48, %c0_48], %163 {strides = array<i32>} : memref<64x32xf32, #tpu.memory_space<vmem>>, vector<8x32xf32>,
    %165 = vector.extract_strided_slice %5 {offsets = [56, 0], sizes = [8, 128], strides = [1, 1]} : vector<64x128xf32> to vector<8x128xf32>
    %cst_49 = arith.constant dense<0.000000e+00> : vector<8x128xf32>
    %166 = tpu.matmul %163, %6, %cst_49 {dimension_numbers = #tpu.dot_dimension_numbers<[1], [0], [0], [1], [0, 0, 1, 1], [], []>} : vector<8x32xf32>, vector<32x128xf32>, vector<8x128xf32> -> vector<8x128xf32>
    %167 = arith.addf %165, %166 : vector<8x128xf32>
    %168 = arith.negf %167 : vector<8x128xf32>
    %169 = math.exp %168 : vector<8x128xf32>
    %cst_50 = arith.constant 1.000000e+00 : f32
    %170 = vector.broadcast %cst_50 : f32 to vector<8x128xf32>
    %171 = arith.addf %170, %169 : vector<8x128xf32>
    %172 = arith.divf %170, %171 : vector<8x128xf32>
    %173 = vector.extract_strided_slice %172 {offsets = [0, 0], sizes = [8, 32], strides = [1, 1]} : vector<8x128xf32> to vector<8x32xf32>
    %174 = vector.extract_strided_slice %172 {offsets = [0, 32], sizes = [8, 32], strides = [1, 1]} : vector<8x128xf32> to vector<8x32xf32>
    %175 = vector.extract_strided_slice %172 {offsets = [0, 64], sizes = [8, 32], strides = [1, 1]} : vector<8x128xf32> to vector<8x32xf32>
    %cst_51 = arith.constant 2.000000e+00 : f32
    %176 = vector.broadcast %cst_51 : f32 to vector<8x32xf32>
    %177 = arith.mulf %176, %175 : vector<8x32xf32>
    %cst_52 = arith.constant 1.000000e+00 : f32
    %178 = vector.broadcast %cst_52 : f32 to vector<8x32xf32>
    %179 = arith.subf %177, %178 : vector<8x32xf32>
    %180 = vector.extract_strided_slice %172 {offsets = [0, 96], sizes = [8, 32], strides = [1, 1]} : vector<8x128xf32> to vector<8x32xf32>
    %181 = arith.mulf %174, %161 : vector<8x32xf32>
    %182 = arith.mulf %173, %179 : vector<8x32xf32>
    %183 = arith.addf %181, %182 : vector<8x32xf32>
    %184 = math.tanh %183 : vector<8x32xf32>
    %185 = arith.mulf %180, %184 : vector<8x32xf32>
    %c56 = arith.constant 56 : index
    %c0_53 = arith.constant 0 : index
    %186 = vector.load %arg14[%c56, %c0_53] : memref<64x32xf32, #tpu.memory_space<vmem>>, vector<8x32xf32>
    tpu.vector_store %arg14[%c56, %c0_53], %185 {strides = array<i32>} : memref<64x32xf32, #tpu.memory_space<vmem>>, vector<8x32xf32>,
    %c0_54 = arith.constant 0 : index
    %c0_55 = arith.constant 0 : index
    %c0_56 = arith.constant 0 : index
    %187 = vector.load %arg12[%c0_54, %c0_55, %c0_56] : memref<2x8x32xf32, #tpu.memory_space<vmem>>, vector<1x8x32xf32>
    %188 = vector.shape_cast %187 : vector<1x8x32xf32> to vector<8x32xf32>
    %189 = vector.shape_cast %185 : vector<8x32xf32> to vector<1x8x32xf32>
    tpu.vector_store %arg12[%c0_54, %c0_55, %c0_56], %189 {strides = array<i32>} : memref<2x8x32xf32, #tpu.memory_space<vmem>>, vector<1x8x32xf32>,
    %c0_57 = arith.constant 0 : index
    %c0_58 = arith.constant 0 : index
    %c0_59 = arith.constant 0 : index
    %190 = vector.load %arg13[%c0_57, %c0_58, %c0_59] : memref<2x8x32xf32, #tpu.memory_space<vmem>>, vector<1x8x32xf32>
    %191 = vector.shape_cast %190 : vector<1x8x32xf32> to vector<8x32xf32>
    %192 = vector.shape_cast %183 : vector<8x32xf32> to vector<1x8x32xf32>
    tpu.vector_store %arg13[%c0_57, %c0_58, %c0_59], %192 {strides = array<i32>} : memref<2x8x32xf32, #tpu.memory_space<vmem>>, vector<1x8x32xf32>,
    %c0_60 = arith.constant 0 : index
    %c0_61 = arith.constant 0 : index
    %193 = vector.load %arg14[%c0_60, %c0_61] : memref<64x32xf32, #tpu.memory_space<vmem>>, vector<64x32xf32>
    %c0_62 = arith.constant 0 : index
    %c0_63 = arith.constant 0 : index
    %194 = vector.load %arg6[%c0_62, %c0_63] : memref<32x128xf32, #tpu.memory_space<vmem>>, vector<32x128xf32>
    %cst_64 = arith.constant dense<0.000000e+00> : vector<64x128xf32>
    %195 = tpu.matmul %193, %194, %cst_64 {dimension_numbers = #tpu.dot_dimension_numbers<[1], [0], [0], [1], [0, 0, 1, 1], [], []>} : vector<64x32xf32>, vector<32x128xf32>, vector<64x128xf32> -> vector<64x128xf32>
    %c0_65 = arith.constant 0 : index
    %c0_66 = arith.constant 0 : index
    %196 = vector.load %arg8[%c0_65, %c0_66] : memref<1x128xf32, #tpu.memory_space<vmem>>, vector<1x128xf32>
    %197 = vector.broadcast %196 : vector<1x128xf32> to vector<64x128xf32>
    %198 = arith.addf %195, %197 : vector<64x128xf32>
    %c0_67 = arith.constant 0 : index
    %c0_68 = arith.constant 0 : index
    %199 = vector.load %arg7[%c0_67, %c0_68] : memref<32x128xf32, #tpu.memory_space<vmem>>, vector<32x128xf32>
    %c1 = arith.constant 1 : index
    %c0_69 = arith.constant 0 : index
    %c0_70 = arith.constant 0 : index
    %200 = vector.load %arg1[%c1, %c0_69, %c0_70] : memref<2x8x32xf32, #tpu.memory_space<vmem>>, vector<1x8x32xf32>
    %201 = vector.shape_cast %200 : vector<1x8x32xf32> to vector<8x32xf32>
    %c1_71 = arith.constant 1 : index
    %c0_72 = arith.constant 0 : index
    %c0_73 = arith.constant 0 : index
    %202 = vector.load %arg2[%c1_71, %c0_72, %c0_73] : memref<2x8x32xf32, #tpu.memory_space<vmem>>, vector<1x8x32xf32>
    %203 = vector.shape_cast %202 : vector<1x8x32xf32> to vector<8x32xf32>
    %204 = vector.extract_strided_slice %198 {offsets = [0, 0], sizes = [8, 128], strides = [1, 1]} : vector<64x128xf32> to vector<8x128xf32>
    %cst_74 = arith.constant dense<0.000000e+00> : vector<8x128xf32>
    %205 = tpu.matmul %201, %199, %cst_74 {dimension_numbers = #tpu.dot_dimension_numbers<[1], [0], [0], [1], [0, 0, 1, 1], [], []>} : vector<8x32xf32>, vector<32x128xf32>, vector<8x128xf32> -> vector<8x128xf32>
    %206 = arith.addf %204, %205 : vector<8x128xf32>
    %207 = arith.negf %206 : vector<8x128xf32>
    %208 = math.exp %207 : vector<8x128xf32>
    %cst_75 = arith.constant 1.000000e+00 : f32
    %209 = vector.broadcast %cst_75 : f32 to vector<8x128xf32>
    %210 = arith.addf %209, %208 : vector<8x128xf32>
    %211 = arith.divf %209, %210 : vector<8x128xf32>
    %212 = vector.extract_strided_slice %211 {offsets = [0, 0], sizes = [8, 32], strides = [1, 1]} : vector<8x128xf32> to vector<8x32xf32>
    %213 = vector.extract_strided_slice %211 {offsets = [0, 32], sizes = [8, 32], strides = [1, 1]} : vector<8x128xf32> to vector<8x32xf32>
    %214 = vector.extract_strided_slice %211 {offsets = [0, 64], sizes = [8, 32], strides = [1, 1]} : vector<8x128xf32> to vector<8x32xf32>
    %cst_76 = arith.constant 2.000000e+00 : f32
    %215 = vector.broadcast %cst_76 : f32 to vector<8x32xf32>
    %216 = arith.mulf %215, %214 : vector<8x32xf32>
    %cst_77 = arith.constant 1.000000e+00 : f32
    %217 = vector.broadcast %cst_77 : f32 to vector<8x32xf32>
    %218 = arith.subf %216, %217 : vector<8x32xf32>
    %219 = vector.extract_strided_slice %211 {offsets = [0, 96], sizes = [8, 32], strides = [1, 1]} : vector<8x128xf32> to vector<8x32xf32>
    %220 = arith.mulf %213, %203 : vector<8x32xf32>
    %221 = arith.mulf %212, %218 : vector<8x32xf32>
    %222 = arith.addf %220, %221 : vector<8x32xf32>
    %223 = math.tanh %222 : vector<8x32xf32>
    %224 = arith.mulf %219, %223 : vector<8x32xf32>
    %225 = vector.extract_strided_slice %198 {offsets = [8, 0], sizes = [8, 128], strides = [1, 1]} : vector<64x128xf32> to vector<8x128xf32>
    %cst_78 = arith.constant dense<0.000000e+00> : vector<8x128xf32>
    %226 = tpu.matmul %224, %199, %cst_78 {dimension_numbers = #tpu.dot_dimension_numbers<[1], [0], [0], [1], [0, 0, 1, 1], [], []>} : vector<8x32xf32>, vector<32x128xf32>, vector<8x128xf32> -> vector<8x128xf32>
    %227 = arith.addf %225, %226 : vector<8x128xf32>
    %228 = arith.negf %227 : vector<8x128xf32>
    %229 = math.exp %228 : vector<8x128xf32>
    %cst_79 = arith.constant 1.000000e+00 : f32
    %230 = vector.broadcast %cst_79 : f32 to vector<8x128xf32>
    %231 = arith.addf %230, %229 : vector<8x128xf32>
    %232 = arith.divf %230, %231 : vector<8x128xf32>
    %233 = vector.extract_strided_slice %232 {offsets = [0, 0], sizes = [8, 32], strides = [1, 1]} : vector<8x128xf32> to vector<8x32xf32>
    %234 = vector.extract_strided_slice %232 {offsets = [0, 32], sizes = [8, 32], strides = [1, 1]} : vector<8x128xf32> to vector<8x32xf32>
    %235 = vector.extract_strided_slice %232 {offsets = [0, 64], sizes = [8, 32], strides = [1, 1]} : vector<8x128xf32> to vector<8x32xf32>
    %cst_80 = arith.constant 2.000000e+00 : f32
    %236 = vector.broadcast %cst_80 : f32 to vector<8x32xf32>
    %237 = arith.mulf %236, %235 : vector<8x32xf32>
    %cst_81 = arith.constant 1.000000e+00 : f32
    %238 = vector.broadcast %cst_81 : f32 to vector<8x32xf32>
    %239 = arith.subf %237, %238 : vector<8x32xf32>
    %240 = vector.extract_strided_slice %232 {offsets = [0, 96], sizes = [8, 32], strides = [1, 1]} : vector<8x128xf32> to vector<8x32xf32>
    %241 = arith.mulf %234, %222 : vector<8x32xf32>
    %242 = arith.mulf %233, %239 : vector<8x32xf32>
    %243 = arith.addf %241, %242 : vector<8x32xf32>
    %244 = math.tanh %243 : vector<8x32xf32>
    %245 = arith.mulf %240, %244 : vector<8x32xf32>
    %246 = vector.extract_strided_slice %198 {offsets = [16, 0], sizes = [8, 128], strides = [1, 1]} : vector<64x128xf32> to vector<8x128xf32>
    %cst_82 = arith.constant dense<0.000000e+00> : vector<8x128xf32>
    %247 = tpu.matmul %245, %199, %cst_82 {dimension_numbers = #tpu.dot_dimension_numbers<[1], [0], [0], [1], [0, 0, 1, 1], [], []>} : vector<8x32xf32>, vector<32x128xf32>, vector<8x128xf32> -> vector<8x128xf32>
    %248 = arith.addf %246, %247 : vector<8x128xf32>
    %249 = arith.negf %248 : vector<8x128xf32>
    %250 = math.exp %249 : vector<8x128xf32>
    %cst_83 = arith.constant 1.000000e+00 : f32
    %251 = vector.broadcast %cst_83 : f32 to vector<8x128xf32>
    %252 = arith.addf %251, %250 : vector<8x128xf32>
    %253 = arith.divf %251, %252 : vector<8x128xf32>
    %254 = vector.extract_strided_slice %253 {offsets = [0, 0], sizes = [8, 32], strides = [1, 1]} : vector<8x128xf32> to vector<8x32xf32>
    %255 = vector.extract_strided_slice %253 {offsets = [0, 32], sizes = [8, 32], strides = [1, 1]} : vector<8x128xf32> to vector<8x32xf32>
    %256 = vector.extract_strided_slice %253 {offsets = [0, 64], sizes = [8, 32], strides = [1, 1]} : vector<8x128xf32> to vector<8x32xf32>
    %cst_84 = arith.constant 2.000000e+00 : f32
    %257 = vector.broadcast %cst_84 : f32 to vector<8x32xf32>
    %258 = arith.mulf %257, %256 : vector<8x32xf32>
    %cst_85 = arith.constant 1.000000e+00 : f32
    %259 = vector.broadcast %cst_85 : f32 to vector<8x32xf32>
    %260 = arith.subf %258, %259 : vector<8x32xf32>
    %261 = vector.extract_strided_slice %253 {offsets = [0, 96], sizes = [8, 32], strides = [1, 1]} : vector<8x128xf32> to vector<8x32xf32>
    %262 = arith.mulf %255, %243 : vector<8x32xf32>
    %263 = arith.mulf %254, %260 : vector<8x32xf32>
    %264 = arith.addf %262, %263 : vector<8x32xf32>
    %265 = math.tanh %264 : vector<8x32xf32>
    %266 = arith.mulf %261, %265 : vector<8x32xf32>
    %267 = vector.extract_strided_slice %198 {offsets = [24, 0], sizes = [8, 128], strides = [1, 1]} : vector<64x128xf32> to vector<8x128xf32>
    %cst_86 = arith.constant dense<0.000000e+00> : vector<8x128xf32>
    %268 = tpu.matmul %266, %199, %cst_86 {dimension_numbers = #tpu.dot_dimension_numbers<[1], [0], [0], [1], [0, 0, 1, 1], [], []>} : vector<8x32xf32>, vector<32x128xf32>, vector<8x128xf32> -> vector<8x128xf32>
    %269 = arith.addf %267, %268 : vector<8x128xf32>
    %270 = arith.negf %269 : vector<8x128xf32>
    %271 = math.exp %270 : vector<8x128xf32>
    %cst_87 = arith.constant 1.000000e+00 : f32
    %272 = vector.broadcast %cst_87 : f32 to vector<8x128xf32>
    %273 = arith.addf %272, %271 : vector<8x128xf32>
    %274 = arith.divf %272, %273 : vector<8x128xf32>
    %275 = vector.extract_strided_slice %274 {offsets = [0, 0], sizes = [8, 32], strides = [1, 1]} : vector<8x128xf32> to vector<8x32xf32>
    %276 = vector.extract_strided_slice %274 {offsets = [0, 32], sizes = [8, 32], strides = [1, 1]} : vector<8x128xf32> to vector<8x32xf32>
    %277 = vector.extract_strided_slice %274 {offsets = [0, 64], sizes = [8, 32], strides = [1, 1]} : vector<8x128xf32> to vector<8x32xf32>
    %cst_88 = arith.constant 2.000000e+00 : f32
    %278 = vector.broadcast %cst_88 : f32 to vector<8x32xf32>
    %279 = arith.mulf %278, %277 : vector<8x32xf32>
    %cst_89 = arith.constant 1.000000e+00 : f32
    %280 = vector.broadcast %cst_89 : f32 to vector<8x32xf32>
    %281 = arith.subf %279, %280 : vector<8x32xf32>
    %282 = vector.extract_strided_slice %274 {offsets = [0, 96], sizes = [8, 32], strides = [1, 1]} : vector<8x128xf32> to vector<8x32xf32>
    %283 = arith.mulf %276, %264 : vector<8x32xf32>
    %284 = arith.mulf %275, %281 : vector<8x32xf32>
    %285 = arith.addf %283, %284 : vector<8x32xf32>
    %286 = math.tanh %285 : vector<8x32xf32>
    %287 = arith.mulf %282, %286 : vector<8x32xf32>
    %288 = vector.extract_strided_slice %198 {offsets = [32, 0], sizes = [8, 128], strides = [1, 1]} : vector<64x128xf32> to vector<8x128xf32>
    %cst_90 = arith.constant dense<0.000000e+00> : vector<8x128xf32>
    %289 = tpu.matmul %287, %199, %cst_90 {dimension_numbers = #tpu.dot_dimension_numbers<[1], [0], [0], [1], [0, 0, 1, 1], [], []>} : vector<8x32xf32>, vector<32x128xf32>, vector<8x128xf32> -> vector<8x128xf32>
    %290 = arith.addf %288, %289 : vector<8x128xf32>
    %291 = arith.negf %290 : vector<8x128xf32>
    %292 = math.exp %291 : vector<8x128xf32>
    %cst_91 = arith.constant 1.000000e+00 : f32
    %293 = vector.broadcast %cst_91 : f32 to vector<8x128xf32>
    %294 = arith.addf %293, %292 : vector<8x128xf32>
    %295 = arith.divf %293, %294 : vector<8x128xf32>
    %296 = vector.extract_strided_slice %295 {offsets = [0, 0], sizes = [8, 32], strides = [1, 1]} : vector<8x128xf32> to vector<8x32xf32>
    %297 = vector.extract_strided_slice %295 {offsets = [0, 32], sizes = [8, 32], strides = [1, 1]} : vector<8x128xf32> to vector<8x32xf32>
    %298 = vector.extract_strided_slice %295 {offsets = [0, 64], sizes = [8, 32], strides = [1, 1]} : vector<8x128xf32> to vector<8x32xf32>
    %cst_92 = arith.constant 2.000000e+00 : f32
    %299 = vector.broadcast %cst_92 : f32 to vector<8x32xf32>
    %300 = arith.mulf %299, %298 : vector<8x32xf32>
    %cst_93 = arith.constant 1.000000e+00 : f32
    %301 = vector.broadcast %cst_93 : f32 to vector<8x32xf32>
    %302 = arith.subf %300, %301 : vector<8x32xf32>
    %303 = vector.extract_strided_slice %295 {offsets = [0, 96], sizes = [8, 32], strides = [1, 1]} : vector<8x128xf32> to vector<8x32xf32>
    %304 = arith.mulf %297, %285 : vector<8x32xf32>
    %305 = arith.mulf %296, %302 : vector<8x32xf32>
    %306 = arith.addf %304, %305 : vector<8x32xf32>
    %307 = math.tanh %306 : vector<8x32xf32>
    %308 = arith.mulf %303, %307 : vector<8x32xf32>
    %309 = vector.extract_strided_slice %198 {offsets = [40, 0], sizes = [8, 128], strides = [1, 1]} : vector<64x128xf32> to vector<8x128xf32>
    %cst_94 = arith.constant dense<0.000000e+00> : vector<8x128xf32>
    %310 = tpu.matmul %308, %199, %cst_94 {dimension_numbers = #tpu.dot_dimension_numbers<[1], [0], [0], [1], [0, 0, 1, 1], [], []>} : vector<8x32xf32>, vector<32x128xf32>, vector<8x128xf32> -> vector<8x128xf32>
    %311 = arith.addf %309, %310 : vector<8x128xf32>
    %312 = arith.negf %311 : vector<8x128xf32>
    %313 = math.exp %312 : vector<8x128xf32>
    %cst_95 = arith.constant 1.000000e+00 : f32
    %314 = vector.broadcast %cst_95 : f32 to vector<8x128xf32>
    %315 = arith.addf %314, %313 : vector<8x128xf32>
    %316 = arith.divf %314, %315 : vector<8x128xf32>
    %317 = vector.extract_strided_slice %316 {offsets = [0, 0], sizes = [8, 32], strides = [1, 1]} : vector<8x128xf32> to vector<8x32xf32>
    %318 = vector.extract_strided_slice %316 {offsets = [0, 32], sizes = [8, 32], strides = [1, 1]} : vector<8x128xf32> to vector<8x32xf32>
    %319 = vector.extract_strided_slice %316 {offsets = [0, 64], sizes = [8, 32], strides = [1, 1]} : vector<8x128xf32> to vector<8x32xf32>
    %cst_96 = arith.constant 2.000000e+00 : f32
    %320 = vector.broadcast %cst_96 : f32 to vector<8x32xf32>
    %321 = arith.mulf %320, %319 : vector<8x32xf32>
    %cst_97 = arith.constant 1.000000e+00 : f32
    %322 = vector.broadcast %cst_97 : f32 to vector<8x32xf32>
    %323 = arith.subf %321, %322 : vector<8x32xf32>
    %324 = vector.extract_strided_slice %316 {offsets = [0, 96], sizes = [8, 32], strides = [1, 1]} : vector<8x128xf32> to vector<8x32xf32>
    %325 = arith.mulf %318, %306 : vector<8x32xf32>
    %326 = arith.mulf %317, %323 : vector<8x32xf32>
    %327 = arith.addf %325, %326 : vector<8x32xf32>
    %328 = math.tanh %327 : vector<8x32xf32>
    %329 = arith.mulf %324, %328 : vector<8x32xf32>
    %330 = vector.extract_strided_slice %198 {offsets = [48, 0], sizes = [8, 128], strides = [1, 1]} : vector<64x128xf32> to vector<8x128xf32>
    %cst_98 = arith.constant dense<0.000000e+00> : vector<8x128xf32>
    %331 = tpu.matmul %329, %199, %cst_98 {dimension_numbers = #tpu.dot_dimension_numbers<[1], [0], [0], [1], [0, 0, 1, 1], [], []>} : vector<8x32xf32>, vector<32x128xf32>, vector<8x128xf32> -> vector<8x128xf32>
    %332 = arith.addf %330, %331 : vector<8x128xf32>
    %333 = arith.negf %332 : vector<8x128xf32>
    %334 = math.exp %333 : vector<8x128xf32>
    %cst_99 = arith.constant 1.000000e+00 : f32
    %335 = vector.broadcast %cst_99 : f32 to vector<8x128xf32>
    %336 = arith.addf %335, %334 : vector<8x128xf32>
    %337 = arith.divf %335, %336 : vector<8x128xf32>
    %338 = vector.extract_strided_slice %337 {offsets = [0, 0], sizes = [8, 32], strides = [1, 1]} : vector<8x128xf32> to vector<8x32xf32>
    %339 = vector.extract_strided_slice %337 {offsets = [0, 32], sizes = [8, 32], strides = [1, 1]} : vector<8x128xf32> to vector<8x32xf32>
    %340 = vector.extract_strided_slice %337 {offsets = [0, 64], sizes = [8, 32], strides = [1, 1]} : vector<8x128xf32> to vector<8x32xf32>
    %cst_100 = arith.constant 2.000000e+00 : f32
    %341 = vector.broadcast %cst_100 : f32 to vector<8x32xf32>
    %342 = arith.mulf %341, %340 : vector<8x32xf32>
    %cst_101 = arith.constant 1.000000e+00 : f32
    %343 = vector.broadcast %cst_101 : f32 to vector<8x32xf32>
    %344 = arith.subf %342, %343 : vector<8x32xf32>
    %345 = vector.extract_strided_slice %337 {offsets = [0, 96], sizes = [8, 32], strides = [1, 1]} : vector<8x128xf32> to vector<8x32xf32>
    %346 = arith.mulf %339, %327 : vector<8x32xf32>
    %347 = arith.mulf %338, %344 : vector<8x32xf32>
    %348 = arith.addf %346, %347 : vector<8x32xf32>
    %349 = math.tanh %348 : vector<8x32xf32>
    %350 = arith.mulf %345, %349 : vector<8x32xf32>
    %351 = vector.extract_strided_slice %198 {offsets = [56, 0], sizes = [8, 128], strides = [1, 1]} : vector<64x128xf32> to vector<8x128xf32>
    %cst_102 = arith.constant dense<0.000000e+00> : vector<8x128xf32>
    %352 = tpu.matmul %350, %199, %cst_102 {dimension_numbers = #tpu.dot_dimension_numbers<[1], [0], [0], [1], [0, 0, 1, 1], [], []>} : vector<8x32xf32>, vector<32x128xf32>, vector<8x128xf32> -> vector<8x128xf32>
    %353 = arith.addf %351, %352 : vector<8x128xf32>
    %354 = arith.negf %353 : vector<8x128xf32>
    %355 = math.exp %354 : vector<8x128xf32>
    %cst_103 = arith.constant 1.000000e+00 : f32
    %356 = vector.broadcast %cst_103 : f32 to vector<8x128xf32>
    %357 = arith.addf %356, %355 : vector<8x128xf32>
    %358 = arith.divf %356, %357 : vector<8x128xf32>
    %359 = vector.extract_strided_slice %358 {offsets = [0, 0], sizes = [8, 32], strides = [1, 1]} : vector<8x128xf32> to vector<8x32xf32>
    %360 = vector.extract_strided_slice %358 {offsets = [0, 32], sizes = [8, 32], strides = [1, 1]} : vector<8x128xf32> to vector<8x32xf32>
    %361 = vector.extract_strided_slice %358 {offsets = [0, 64], sizes = [8, 32], strides = [1, 1]} : vector<8x128xf32> to vector<8x32xf32>
    %cst_104 = arith.constant 2.000000e+00 : f32
    %362 = vector.broadcast %cst_104 : f32 to vector<8x32xf32>
    %363 = arith.mulf %362, %361 : vector<8x32xf32>
    %cst_105 = arith.constant 1.000000e+00 : f32
    %364 = vector.broadcast %cst_105 : f32 to vector<8x32xf32>
    %365 = arith.subf %363, %364 : vector<8x32xf32>
    %366 = vector.extract_strided_slice %358 {offsets = [0, 96], sizes = [8, 32], strides = [1, 1]} : vector<8x128xf32> to vector<8x32xf32>
    %367 = arith.mulf %360, %348 : vector<8x32xf32>
    %368 = arith.mulf %359, %365 : vector<8x32xf32>
    %369 = arith.addf %367, %368 : vector<8x32xf32>
    %370 = math.tanh %369 : vector<8x32xf32>
    %371 = arith.mulf %366, %370 : vector<8x32xf32>
    %c1_106 = arith.constant 1 : index
    %c0_107 = arith.constant 0 : index
    %c0_108 = arith.constant 0 : index
    %372 = vector.load %arg12[%c1_106, %c0_107, %c0_108] : memref<2x8x32xf32, #tpu.memory_space<vmem>>, vector<1x8x32xf32>
    %373 = vector.shape_cast %372 : vector<1x8x32xf32> to vector<8x32xf32>
    %374 = vector.shape_cast %371 : vector<8x32xf32> to vector<1x8x32xf32>
    tpu.vector_store %arg12[%c1_106, %c0_107, %c0_108], %374 {strides = array<i32>} : memref<2x8x32xf32, #tpu.memory_space<vmem>>, vector<1x8x32xf32>,
    %c1_109 = arith.constant 1 : index
    %c0_110 = arith.constant 0 : index
    %c0_111 = arith.constant 0 : index
    %375 = vector.load %arg13[%c1_109, %c0_110, %c0_111] : memref<2x8x32xf32, #tpu.memory_space<vmem>>, vector<1x8x32xf32>
    %376 = vector.shape_cast %375 : vector<1x8x32xf32> to vector<8x32xf32>
    %377 = vector.shape_cast %369 : vector<8x32xf32> to vector<1x8x32xf32>
    tpu.vector_store %arg13[%c1_109, %c0_110, %c0_111], %377 {strides = array<i32>} : memref<2x8x32xf32, #tpu.memory_space<vmem>>, vector<1x8x32xf32>,
    %c0_112 = arith.constant 0 : index
    %c0_113 = arith.constant 0 : index
    %378 = vector.load %arg9[%c0_112, %c0_113] : memref<32x128xf32, #tpu.memory_space<vmem>>, vector<32x128xf32>
    %cst_114 = arith.constant dense<0.000000e+00> : vector<8x128xf32>
    %379 = tpu.matmul %371, %378, %cst_114 {dimension_numbers = #tpu.dot_dimension_numbers<[1], [0], [0], [1], [0, 0, 1, 1], [], []>} : vector<8x32xf32>, vector<32x128xf32>, vector<8x128xf32> -> vector<8x128xf32>
    %c0_115 = arith.constant 0 : index
    %c0_116 = arith.constant 0 : index
    %380 = vector.load %arg10[%c0_115, %c0_116] : memref<1x128xf32, #tpu.memory_space<vmem>>, vector<1x128xf32>
    %381 = vector.broadcast %380 : vector<1x128xf32> to vector<8x128xf32>
    %382 = arith.addf %379, %381 : vector<8x128xf32>
    %c0_117 = arith.constant 0 : index
    %c0_118 = arith.constant 0 : index
    %383 = vector.load %arg11[%c0_117, %c0_118] : memref<8x128xf32, #tpu.memory_space<vmem>>, vector<8x128xf32>
    tpu.vector_store %arg11[%c0_117, %c0_118], %382 {strides = array<i32>} : memref<8x128xf32, #tpu.memory_space<vmem>>, vector<8x128xf32>,
    return
  }
}

</mosaic_0001>

<llo_original>
// kernel: tpu_custom_call.1
$region0: #{tpu_custom_call.1}
  #allocation0 [shape = 'u32[]', space=smem, size = 0x4, offset = 0x4, fixed_abs, tag = 'smem constant byte address 0x4 - core index']
  #allocation1 [shape = 'u32[72,128]{1,0:T(1,128)}', space=vmem, size = 0x9000, scoped, tag = 'internal scratch']
  #allocation2 [shape = 'f32[64,32]{1,0:T(8,128)}', space=vmem, size = 0x8000, scoped, tag = 'scratch operand']
  %s0 = inlined_call_operand.vmem [shape: f32[64,16], index: 0, kind: input, shape index: {}]
  %s1 = inlined_call_operand.vmem [shape: f32[2,8,32], index: 1, kind: input, shape index: {}]
  %s2 = inlined_call_operand.hbm [shape: f32[2,8,32], index: 2, kind: input, shape index: {}]
  %s3 = inlined_call_operand.hbm [shape: f32[16,128], index: 3, kind: input, shape index: {}]
  %s4 = inlined_call_operand.vmem [shape: f32[32,128], index: 4, kind: input, shape index: {}]
  %s5 = inlined_call_operand.vmem [shape: f32[1,128], index: 5, kind: input, shape index: {}]
  %s6 = inlined_call_operand.vmem [shape: f32[32,128], index: 6, kind: input, shape index: {}]
  %s7 = inlined_call_operand.hbm [shape: f32[32,128], index: 7, kind: input, shape index: {}]
  %s8 = inlined_call_operand.vmem [shape: f32[1,128], index: 8, kind: input, shape index: {}]
  %s9 = inlined_call_operand.hbm [shape: f32[32,128], index: 9, kind: input, shape index: {}]
  %s10 = inlined_call_operand.vmem [shape: f32[1,128], index: 10, kind: input, shape index: {}]
  %s11 = inlined_call_operand.hbm [shape: f32[8,128], index: 11, kind: output, shape index: {0}]
  %s12 = inlined_call_operand.hbm [shape: f32[2,8,32], index: 12, kind: output, shape index: {1}]
  %s13 = inlined_call_operand.hbm [shape: f32[2,8,32], index: 13, kind: output, shape index: {2}]
  %14 = xla_tuple %s11, %s12, %s13
  %s15 = sld [smem:[#allocation0]]
  $region86: #{tpu_custom_call.1} parent=0
    _
  %s17 = ssub.s32 1, %s15
  %s18 = scalar_select 0, %s17, %s15
  $region1: #{tpu_custom_call.1} parent=0
    #allocation3 [shape = 'u8[8192]{0}', space=vmem, size = 0x2000, scoped, tag = 'input window, operand 2, single buffered']
    #allocation4 [shape = 's32[1]{0}', space=sflag, size = 0x4, scoped, tag = 'scoped memory for tpu_custom_call.1']
    #allocation5 [shape = 's32[1]{0}', space=sflag, size = 0x4, scoped, tag = 'scoped memory for tpu_custom_call.1']
    #allocation6 [shape = 'u8[8192]{0}', space=vmem, size = 0x2000, scoped, tag = 'input window, operand 3, single buffered']
    #allocation7 [shape = 's32[1]{0}', space=sflag, size = 0x4, scoped, tag = 'scoped memory for tpu_custom_call.1']
    #allocation8 [shape = 'u8[16384]{0}', space=vmem, size = 0x4000, scoped, tag = 'input window, operand 7, single buffered']
    #allocation9 [shape = 'u8[16384]{0}', space=vmem, size = 0x4000, scoped, tag = 'input window, operand 9, single buffered']
    #allocation10 [shape = 's32[1]{0}', space=sflag, size = 0x4, scoped, tag = 'scoped memory for tpu_custom_call.1']
    #allocation11 [shape = 'u8[4096]{0}', space=vmem, size = 0x1000, scoped, tag = 'output window, operand 0, single buffered']
    #allocation12 [shape = 'u8[8192]{0}', space=vmem, size = 0x2000, scoped, tag = 'output window, operand 1, single buffered']
    #allocation13 [shape = 's32[1]{0}', space=sflag, size = 0x4, scoped, tag = 'scoped memory for tpu_custom_call.1']
    #allocation14 [shape = 'u8[8192]{0}', space=vmem, size = 0x2000, scoped, tag = 'output window, operand 2, single buffered']
    %19 = vsyncpa [#allocation4], 0
    %20 = vsyncpa [#allocation7], 0
    %21 = vsyncpa [#allocation10], 0
    %22 = vsyncpa [#allocation5], 0
    %23 = vsyncpa [#allocation13], 0
    // Predicated region
    $region2: #{tpu_custom_call.1} parent=1 // pred_check
      _
    $region3: #{tpu_custom_call.1} parent=1 // pred_check_branch
      %25 = sbr.rel (0) target = $region5
    $region4: #{tpu_custom_call.1} parent=1 // pred_region
      _
    $region5: #{tpu_custom_call.1} parent=1 // pred_fallthru
      _
    // Predicated region
    $region6: #{tpu_custom_call.1} parent=1 // pred_check
      _
    $region7: #{tpu_custom_call.1} parent=1 // pred_check_branch
      %27 = sbr.rel (0) target = $region9
    $region8: #{tpu_custom_call.1} parent=1 // pred_region
      _
    $region9: #{tpu_custom_call.1} parent=1 // pred_fallthru
      _
    // Predicated region
    $region10: #{tpu_custom_call.1} parent=1 // pred_check
      _
    $region11: #{tpu_custom_call.1} parent=1 // pred_check_branch
      %29 = sbr.rel (0) target = $region13
    $region12: #{tpu_custom_call.1} parent=1 // pred_region
      %31 = vsyncadd [#allocation4], 0
      %s32 = sshll.u32 %s2, 4
      %s33 = int_to_ptr.hbm [resolvable:$true] %s32
      %s34 = sshll.u32 [#allocation3], 4
      %s35 = int_to_ptr.vmem [resolvable:$true] %s34
      %40 = dma.hbm_to_vmem [thread:$0]  %s33, 256, %s35, [#allocation4], 128, 128, 8
    $region13: #{tpu_custom_call.1} parent=1 // pred_fallthru
      _
    // Predicated region
    $region14: #{tpu_custom_call.1} parent=1 // pred_check
      _
    $region15: #{tpu_custom_call.1} parent=1 // pred_check_branch
      %42 = sbr.rel (0) target = $region17
    $region16: #{tpu_custom_call.1} parent=1 // pred_region
      %44 = vsyncadd [#allocation7], 0
      %s45 = sshll.u32 %s3, 4
      %s46 = int_to_ptr.hbm [resolvable:$true] %s45
      %s47 = sshll.u32 [#allocation6], 4
      %s48 = int_to_ptr.vmem [resolvable:$true] %s47
      %53 = dma.hbm_to_vmem [thread:$0]  %s46, 256, %s48, [#allocation7], 128, 128, 8
    $region17: #{tpu_custom_call.1} parent=1 // pred_fallthru
      _
    // Predicated region
    $region18: #{tpu_custom_call.1} parent=1 // pred_check
      _
    $region19: #{tpu_custom_call.1} parent=1 // pred_check_branch
      %55 = sbr.rel (0) target = $region21
    $region20: #{tpu_custom_call.1} parent=1 // pred_region
      _
    $region21: #{tpu_custom_call.1} parent=1 // pred_fallthru
      _
    // Predicated region
    $region22: #{tpu_custom_call.1} parent=1 // pred_check
      _
    $region23: #{tpu_custom_call.1} parent=1 // pred_check_branch
      %57 = sbr.rel (0) target = $region25
    $region24: #{tpu_custom_call.1} parent=1 // pred_region
      _
    $region25: #{tpu_custom_call.1} parent=1 // pred_fallthru
      _
    // Predicated region
    $region26: #{tpu_custom_call.1} parent=1 // pred_check
      _
    $region27: #{tpu_custom_call.1} parent=1 // pred_check_branch
      %59 = sbr.rel (0) target = $region29
    $region28: #{tpu_custom_call.1} parent=1 // pred_region
      _
    $region29: #{tpu_custom_call.1} parent=1 // pred_fallthru
      _
    // Predicated region
    $region30: #{tpu_custom_call.1} parent=1 // pred_check
      _
    $region31: #{tpu_custom_call.1} parent=1 // pred_check_branch
      %61 = sbr.rel (0) target = $region33
    $region32: #{tpu_custom_call.1} parent=1 // pred_region
      %63 = vsyncadd [#allocation7], 0
      %s64 = sshll.u32 %s7, 4
      %s65 = int_to_ptr.hbm [resolvable:$true] %s64
      %s66 = sshll.u32 [#allocation8], 4
      %s67 = int_to_ptr.vmem [resolvable:$true] %s66
      %72 = dma.hbm_to_vmem [thread:$0]  %s65, 512, %s67, [#allocation7], 128, 128, 8
    $region33: #{tpu_custom_call.1} parent=1 // pred_fallthru
      _
    // Predicated region
    $region34: #{tpu_custom_call.1} parent=1 // pred_check
      _
    $region35: #{tpu_custom_call.1} parent=1 // pred_check_branch
      %74 = sbr.rel (0) target = $region37
    $region36: #{tpu_custom_call.1} parent=1 // pred_region
      _
    $region37: #{tpu_custom_call.1} parent=1 // pred_fallthru
      _
    // Predicated region
    $region38: #{tpu_custom_call.1} parent=1 // pred_check
      _
    $region39: #{tpu_custom_call.1} parent=1 // pred_check_branch
      %76 = sbr.rel (0) target = $region41
    $region40: #{tpu_custom_call.1} parent=1 // pred_region
      %78 = vsyncadd [#allocation10], 0
      %s79 = sshll.u32 %s9, 4
      %s80 = int_to_ptr.hbm [resolvable:$true] %s79
      %s81 = sshll.u32 [#allocation9], 4
      %s82 = int_to_ptr.vmem [resolvable:$true] %s81
      %87 = dma.hbm_to_vmem [thread:$0]  %s80, 512, %s82, [#allocation10], 128, 128, 8
    $region41: #{tpu_custom_call.1} parent=1 // pred_fallthru
      _
    // Predicated region
    $region42: #{tpu_custom_call.1} parent=1 // pred_check
      _
    $region43: #{tpu_custom_call.1} parent=1 // pred_check_branch
      %89 = sbr.rel (0) target = $region45
    $region44: #{tpu_custom_call.1} parent=1 // pred_region
      _
    $region45: #{tpu_custom_call.1} parent=1 // pred_fallthru
      _
    // Predicated region
    $region46: #{tpu_custom_call.1} parent=1 // pred_check
      _
    $region47: #{tpu_custom_call.1} parent=1 // pred_check_branch
      %91 = sbr.rel (0) target = $region49
    $region48: #{tpu_custom_call.1} parent=1 // pred_region
      %93 = dma.done [#allocation4], 256
    $region49: #{tpu_custom_call.1} parent=1 // pred_fallthru
      _
    // Predicated region
    $region50: #{tpu_custom_call.1} parent=1 // pred_check
      _
    $region51: #{tpu_custom_call.1} parent=1 // pred_check_branch
      %95 = sbr.rel (0) target = $region53
    $region52: #{tpu_custom_call.1} parent=1 // pred_region
      %97 = dma.done [#allocation7], 256
    $region53: #{tpu_custom_call.1} parent=1 // pred_fallthru
      _
    // Predicated region
    $region54: #{tpu_custom_call.1} parent=1 // pred_check
      _
    $region55: #{tpu_custom_call.1} parent=1 // pred_check_branch
      %99 = sbr.rel (0) target = $region57
    $region56: #{tpu_custom_call.1} parent=1 // pred_region
      %101 = dma.done [#allocation7], 512
    $region57: #{tpu_custom_call.1} parent=1 // pred_fallthru
      _
    // Predicated region
    $region58: #{tpu_custom_call.1} parent=1 // pred_check
      _
    $region59: #{tpu_custom_call.1} parent=1 // pred_check_branch
      %103 = sbr.rel (0) target = $region61
    $region60: #{tpu_custom_call.1} parent=1 // pred_region
      %105 = dma.done [#allocation10], 512
    $region61: #{tpu_custom_call.1} parent=1 // pred_fallthru
      _
    %v106 = vld [vmem:[%s0] sm:$0xff]
    %v107 = vld [vmem:[%s0 + $0x8] sm:$0xff]
    %v108 = vld [vmem:[%s0 + $0x10] sm:$0xff]
    %v109 = vld [vmem:[%s0 + $0x18] sm:$0xff]
    %v110 = vld [vmem:[%s0 + $0x20] sm:$0xff]
    %v111 = vld [vmem:[%s0 + $0x28] sm:$0xff]
    %v112 = vld [vmem:[%s0 + $0x30] sm:$0xff]
    %v113 = vld [vmem:[%s0 + $0x38] sm:$0xff]
    %v114 = vld [vmem:[#allocation6] sm:$0xff]
    %v115 = vld [vmem:[#allocation6 + $0x8] sm:$0xff]
    %v116 = vld [vmem:[%s5] sm:$0x1]
    %v118 = vperm.slane %v116, 0
    %vm120 = vcmask 130048
    %v122 = vsel %vm120, %v106, 0
    %v125 = vsel %vm120, %v107, 0
    %v128 = vsel %vm120, %v108, 0
    %v131 = vsel %vm120, %v109, 0
    %v134 = vsel %vm120, %v110, 0
    %v137 = vsel %vm120, %v111, 0
    %v140 = vsel %vm120, %v112, 0
    %v143 = vsel %vm120, %v113, 0
    %145 = vmatpush.msra.mxu0 0.0
    %146 = vmatpush.msra.mxu0 0.0
    %147 = vmatpush.msra.mxu0 0.0
    %148 = vmatpush.msra.mxu0 0.0
    %149 = vmatpush.msra.mxu0 0.0
    %150 = vmatpush.msra.mxu0 0.0
    %151 = vmatpush.msra.mxu0 0.0
    %152 = vmatpush.msra.mxu0 0.0
    %153 = vmatpush.msra.mxu0 0.0
    %154 = vmatpush.msra.mxu0 0.0
    %155 = vmatpush.msra.mxu0 0.0
    %156 = vmatpush.msra.mxu0 0.0
    %157 = vmatpush.msra.mxu0 0.0
    %158 = vmatpush.msra.mxu0 0.0
    %159 = vmatpush.msra.mxu0 %v115
    %160 = vmatpush.msra.mxu0 %v114
    %161 = vmatmul.f32.gmra.mxu0 %v122
    %v162 = vpop.f32.mrf.mxu0
    %v163 = vadd.f32 %v118, %v162
    %164 = vmatmul.f32.gmra.mxu0 %v125
    %v165 = vpop.f32.mrf.mxu0
    %v166 = vadd.f32 %v118, %v165
    %167 = vmatmul.f32.gmra.mxu0 %v128
    %v168 = vpop.f32.mrf.mxu0
    %v169 = vadd.f32 %v118, %v168
    %170 = vmatmul.f32.gmra.mxu0 %v131
    %v171 = vpop.f32.mrf.mxu0
    %v172 = vadd.f32 %v118, %v171
    %173 = vmatmul.f32.gmra.mxu0 %v134
    %v174 = vpop.f32.mrf.mxu0
    %v175 = vadd.f32 %v118, %v174
    %176 = vmatmul.f32.gmra.mxu0 %v137
    %v177 = vpop.f32.mrf.mxu0
    %v178 = vadd.f32 %v118, %v177
    %179 = vmatmul.f32.gmra.mxu0 %v140
    %v180 = vpop.f32.mrf.mxu0
    %v181 = vadd.f32 %v118, %v180
    %182 = vmatmul.f32.gmra.mxu0 %v143
    %v183 = vpop.f32.mrf.mxu0
    %v184 = vadd.f32 %v118, %v183
    %185 = vdwg.mxu0
    %v186 = vld [vmem:[%s4] sm:$0xff]
    %v187 = vld [vmem:[%s4 + $0x8] sm:$0xff]
    %v188 = vld [vmem:[%s4 + $0x10] sm:$0xff]
    %v189 = vld [vmem:[%s4 + $0x18] sm:$0xff]
    %v190 = vld [vmem:[%s1] sm:$0xff]
    %v191 = vld [vmem:[#allocation3] sm:$0xff]
    %vm192 = vcmask 261120
    %v194 = vsel %vm192, %v190, 0
    %196 = vmatpush.msra.mxu0 0.0
    %197 = vmatpush.msra.mxu0 0.0
    %198 = vmatpush.msra.mxu0 0.0
    %199 = vmatpush.msra.mxu0 0.0
    %200 = vmatpush.msra.mxu0 0.0
    %201 = vmatpush.msra.mxu0 0.0
    %202 = vmatpush.msra.mxu0 0.0
    %203 = vmatpush.msra.mxu0 0.0
    %204 = vmatpush.msra.mxu0 0.0
    %205 = vmatpush.msra.mxu0 0.0
    %206 = vmatpush.msra.mxu0 0.0
    %207 = vmatpush.msra.mxu0 0.0
    %208 = vmatpush.msra.mxu0 %v189
    %209 = vmatpush.msra.mxu0 %v188
    %210 = vmatpush.msra.mxu0 %v187
    %211 = vmatpush.msra.mxu0 %v186
    %212 = vmatmul.f32.gmra.mxu0 %v194
    %v213 = vpop.f32.mrf.mxu0
    %v214 = vadd.f32 0.0, %v213
    %215 = vdwg.mxu0
    %v216 = vadd.f32 %v163, %v214
    %v217 = vxor.u32 %v216, 2147483648
    %v218 = vmul.f32 %v217, 1.442695
    %v219 = vpow.pop %v218
    %v220 = vadd.f32 %v219, 1.0
    %v221 = vrcp.pop %v220
    %v222 = vmul.f32 %v220, %v221
    %v223 = vsub.f32 1.0, %v222
    %v224 = vmul.f32 %v221, %v223
    %v225 = vadd.f32 %v221, %v224
    %vm226 = vweird.f32 %v220
    %vm227 = vweird.f32 %v221
    %vm228 = vmor %vm226, %vm227
    %v229 = vsel %vm228, %v221, %v225
    %v230 = vand.u32 2147483647, %v220
    %vm231 = vcmp.eq.f32.partialorder %v230, 8.507059e+37
    %v232 = vand.u32 %v220, 2147483648
    %v233 = vor.u32 1.1754944e-38, %v232
    %v234 = vsel %vm231, %v233, %v229
    %v235 = vmul.f32 1.0, %v234
    %v236 = vmul.f32 %v235, 2.0
    %v237 = vsub.f32 %v236, 1.0
    %239 = vrot.lane.b32.xlu0 %v191, 32
    %v240 = vpop.permute.xlu0 %239
    %v242 = vmul.f32 %v235, %v240
    %244 = vrot.lane.b32.xlu0 %v237, 64
    %v245 = vpop.permute.xlu0 %244
    %v247 = vmul.f32 %v235, %v245
    %249 = vrot.lane.b32.xlu0 %v247, 32
    %v250 = vpop.permute.xlu0 %249
    %v252 = vadd.f32 %v242, %v250
    %v253 = vtanh.pop %v252
    %255 = vrot.lane.b32.xlu0 %v253, 64
    %v256 = vpop.permute.xlu0 %255
    %v258 = vmul.f32 %v235, %v256
    %260 = vrot.lane.b32.xlu0 %v258, 32
    %v261 = vpop.permute.xlu0 %260
    %263 = vst.msk [vmem:[#allocation2] sm:$0xff] %vm192, %v261
    %v264 = vsel %vm192, %v261, 0
    %266 = vmatpush.msra.mxu0 0.0
    %267 = vmatpush.msra.mxu0 0.0
    %268 = vmatpush.msra.mxu0 0.0
    %269 = vmatpush.msra.mxu0 0.0
    %270 = vmatpush.msra.mxu0 0.0
    %271 = vmatpush.msra.mxu0 0.0
    %272 = vmatpush.msra.mxu0 0.0
    %273 = vmatpush.msra.mxu0 0.0
    %274 = vmatpush.msra.mxu0 0.0
    %275 = vmatpush.msra.mxu0 0.0
    %276 = vmatpush.msra.mxu0 0.0
    %277 = vmatpush.msra.mxu0 0.0
    %278 = vmatpush.msra.mxu0 %v189
    %279 = vmatpush.msra.mxu0 %v188
    %280 = vmatpush.msra.mxu0 %v187
    %281 = vmatpush.msra.mxu0 %v186
    %282 = vmatmul.f32.gmra.mxu0 %v264
    %v283 = vpop.f32.mrf.mxu0
    %v284 = vadd.f32 0.0, %v283
    %285 = vdwg.mxu0
    %v286 = vadd.f32 %v166, %v284
    %v287 = vxor.u32 %v286, 2147483648
    %v288 = vmul.f32 %v287, 1.442695
    %v289 = vpow.pop %v288
    %v290 = vadd.f32 %v289, 1.0
    %v291 = vrcp.pop %v290
    %v292 = vmul.f32 %v290, %v291
    %v293 = vsub.f32 1.0, %v292
    %v294 = vmul.f32 %v291, %v293
    %v295 = vadd.f32 %v291, %v294
    %vm296 = vweird.f32 %v290
    %vm297 = vweird.f32 %v291
    %vm298 = vmor %vm296, %vm297
    %v299 = vsel %vm298, %v291, %v295
    %v300 = vand.u32 2147483647, %v290
    %vm301 = vcmp.eq.f32.partialorder %v300, 8.507059e+37
    %v302 = vand.u32 %v290, 2147483648
    %v303 = vor.u32 1.1754944e-38, %v302
    %v304 = vsel %vm301, %v303, %v299
    %v305 = vmul.f32 1.0, %v304
    %v306 = vmul.f32 %v305, 2.0
    %v307 = vsub.f32 %v306, 1.0
    %v308 = vmul.f32 %v305, %v252
    %310 = vrot.lane.b32.xlu0 %v307, 64
    %v311 = vpop.permute.xlu0 %310
    %v313 = vmul.f32 %v305, %v311
    %315 = vrot.lane.b32.xlu0 %v313, 32
    %v316 = vpop.permute.xlu0 %315
    %v318 = vadd.f32 %v308, %v316
    %v319 = vtanh.pop %v318
    %321 = vrot.lane.b32.xlu0 %v319, 64
    %v322 = vpop.permute.xlu0 %321
    %v324 = vmul.f32 %v305, %v322
    %326 = vrot.lane.b32.xlu0 %v324, 32
    %v327 = vpop.permute.xlu0 %326
    %329 = vst.msk [vmem:[#allocation2 + $0x8] sm:$0xff] %vm192, %v327
    %v330 = vsel %vm192, %v327, 0
    %332 = vmatpush.msra.mxu0 0.0
    %333 = vmatpush.msra.mxu0 0.0
    %334 = vmatpush.msra.mxu0 0.0
    %335 = vmatpush.msra.mxu0 0.0
    %336 = vmatpush.msra.mxu0 0.0
    %337 = vmatpush.msra.mxu0 0.0
    %338 = vmatpush.msra.mxu0 0.0
    %339 = vmatpush.msra.mxu0 0.0
    %340 = vmatpush.msra.mxu0 0.0
    %341 = vmatpush.msra.mxu0 0.0
    %342 = vmatpush.msra.mxu0 0.0
    %343 = vmatpush.msra.mxu0 0.0
    %344 = vmatpush.msra.mxu0 %v189
    %345 = vmatpush.msra.mxu0 %v188
    %346 = vmatpush.msra.mxu0 %v187
    %347 = vmatpush.msra.mxu0 %v186
    %348 = vmatmul.f32.gmra.mxu0 %v330
    %v349 = vpop.f32.mrf.mxu0
    %v350 = vadd.f32 0.0, %v349
    %351 = vdwg.mxu0
    %v352 = vadd.f32 %v169, %v350
    %v353 = vxor.u32 %v352, 2147483648
    %v354 = vmul.f32 %v353, 1.442695
    %v355 = vpow.pop %v354
    %v356 = vadd.f32 %v355, 1.0
    %v357 = vrcp.pop %v356
    %v358 = vmul.f32 %v356, %v357
    %v359 = vsub.f32 1.0, %v358
    %v360 = vmul.f32 %v357, %v359
    %v361 = vadd.f32 %v357, %v360
    %vm362 = vweird.f32 %v356
    %vm363 = vweird.f32 %v357
    %vm364 = vmor %vm362, %vm363
    %v365 = vsel %vm364, %v357, %v361
    %v366 = vand.u32 2147483647, %v356
    %vm367 = vcmp.eq.f32.partialorder %v366, 8.507059e+37
    %v368 = vand.u32 %v356, 2147483648
    %v369 = vor.u32 1.1754944e-38, %v368
    %v370 = vsel %vm367, %v369, %v365
    %v371 = vmul.f32 1.0, %v370
    %v372 = vmul.f32 %v371, 2.0
    %v373 = vsub.f32 %v372, 1.0
    %v374 = vmul.f32 %v371, %v318
    %376 = vrot.lane.b32.xlu0 %v373, 64
    %v377 = vpop.permute.xlu0 %376
    %v379 = vmul.f32 %v371, %v377
    %381 = vrot.lane.b32.xlu0 %v379, 32
    %v382 = vpop.permute.xlu0 %381
    %v384 = vadd.f32 %v374, %v382
    %v385 = vtanh.pop %v384
    %387 = vrot.lane.b32.xlu0 %v385, 64
    %v388 = vpop.permute.xlu0 %387
    %v390 = vmul.f32 %v371, %v388
    %392 = vrot.lane.b32.xlu0 %v390, 32
    %v393 = vpop.permute.xlu0 %392
    %395 = vst.msk [vmem:[#allocation2 + $0x10] sm:$0xff] %vm192, %v393
    %v396 = vsel %vm192, %v393, 0
    %398 = vmatpush.msra.mxu0 0.0
    %399 = vmatpush.msra.mxu0 0.0
    %400 = vmatpush.msra.mxu0 0.0
    %401 = vmatpush.msra.mxu0 0.0
    %402 = vmatpush.msra.mxu0 0.0
    %403 = vmatpush.msra.mxu0 0.0
    %404 = vmatpush.msra.mxu0 0.0
    %405 = vmatpush.msra.mxu0 0.0
    %406 = vmatpush.msra.mxu0 0.0
    %407 = vmatpush.msra.mxu0 0.0
    %408 = vmatpush.msra.mxu0 0.0
    %409 = vmatpush.msra.mxu0 0.0
    %410 = vmatpush.msra.mxu0 %v189
    %411 = vmatpush.msra.mxu0 %v188
    %412 = vmatpush.msra.mxu0 %v187
    %413 = vmatpush.msra.mxu0 %v186
    %414 = vmatmul.f32.gmra.mxu0 %v396
    %v415 = vpop.f32.mrf.mxu0
    %v416 = vadd.f32 0.0, %v415
    %417 = vdwg.mxu0
    %v418 = vadd.f32 %v172, %v416
    %v419 = vxor.u32 %v418, 2147483648
    %v420 = vmul.f32 %v419, 1.442695
    %v421 = vpow.pop %v420
    %v422 = vadd.f32 %v421, 1.0
    %v423 = vrcp.pop %v422
    %v424 = vmul.f32 %v422, %v423
    %v425 = vsub.f32 1.0, %v424
    %v426 = vmul.f32 %v423, %v425
    %v427 = vadd.f32 %v423, %v426
    %vm428 = vweird.f32 %v422
    %vm429 = vweird.f32 %v423
    %vm430 = vmor %vm428, %vm429
    %v431 = vsel %vm430, %v423, %v427
    %v432 = vand.u32 2147483647, %v422
    %vm433 = vcmp.eq.f32.partialorder %v432, 8.507059e+37
    %v434 = vand.u32 %v422, 2147483648
    %v435 = vor.u32 1.1754944e-38, %v434
    %v436 = vsel %vm433, %v435, %v431
    %v437 = vmul.f32 1.0, %v436
    %v438 = vmul.f32 %v437, 2.0
    %v439 = vsub.f32 %v438, 1.0
    %v440 = vmul.f32 %v437, %v384
    %442 = vrot.lane.b32.xlu0 %v439, 64
    %v443 = vpop.permute.xlu0 %442
    %v445 = vmul.f32 %v437, %v443
    %447 = vrot.lane.b32.xlu0 %v445, 32
    %v448 = vpop.permute.xlu0 %447
    %v450 = vadd.f32 %v440, %v448
    %v451 = vtanh.pop %v450
    %453 = vrot.lane.b32.xlu0 %v451, 64
    %v454 = vpop.permute.xlu0 %453
    %v456 = vmul.f32 %v437, %v454
    %458 = vrot.lane.b32.xlu0 %v456, 32
    %v459 = vpop.permute.xlu0 %458
    %461 = vst.msk [vmem:[#allocation2 + $0x18] sm:$0xff] %vm192, %v459
    %v462 = vsel %vm192, %v459, 0
    %464 = vmatpush.msra.mxu0 0.0
    %465 = vmatpush.msra.mxu0 0.0
    %466 = vmatpush.msra.mxu0 0.0
    %467 = vmatpush.msra.mxu0 0.0
    %468 = vmatpush.msra.mxu0 0.0
    %469 = vmatpush.msra.mxu0 0.0
    %470 = vmatpush.msra.mxu0 0.0
    %471 = vmatpush.msra.mxu0 0.0
    %472 = vmatpush.msra.mxu0 0.0
    %473 = vmatpush.msra.mxu0 0.0
    %474 = vmatpush.msra.mxu0 0.0
    %475 = vmatpush.msra.mxu0 0.0
    %476 = vmatpush.msra.mxu0 %v189
    %477 = vmatpush.msra.mxu0 %v188
    %478 = vmatpush.msra.mxu0 %v187
    %479 = vmatpush.msra.mxu0 %v186
    %480 = vmatmul.f32.gmra.mxu0 %v462
    %v481 = vpop.f32.mrf.mxu0
    %v482 = vadd.f32 0.0, %v481
    %483 = vdwg.mxu0
    %v484 = vadd.f32 %v175, %v482
    %v485 = vxor.u32 %v484, 2147483648
    %v486 = vmul.f32 %v485, 1.442695
    %v487 = vpow.pop %v486
    %v488 = vadd.f32 %v487, 1.0
    %v489 = vrcp.pop %v488
    %v490 = vmul.f32 %v488, %v489
    %v491 = vsub.f32 1.0, %v490
    %v492 = vmul.f32 %v489, %v491
    %v493 = vadd.f32 %v489, %v492
    %vm494 = vweird.f32 %v488
    %vm495 = vweird.f32 %v489
    %vm496 = vmor %vm494, %vm495
    %v497 = vsel %vm496, %v489, %v493
    %v498 = vand.u32 2147483647, %v488
    %vm499 = vcmp.eq.f32.partialorder %v498, 8.507059e+37
    %v500 = vand.u32 %v488, 2147483648
    %v501 = vor.u32 1.1754944e-38, %v500
    %v502 = vsel %vm499, %v501, %v497
    %v503 = vmul.f32 1.0, %v502
    %v504 = vmul.f32 %v503, 2.0
    %v505 = vsub.f32 %v504, 1.0
    %v506 = vmul.f32 %v503, %v450
    %508 = vrot.lane.b32.xlu0 %v505, 64
    %v509 = vpop.permute.xlu0 %508
    %v511 = vmul.f32 %v503, %v509
    %513 = vrot.lane.b32.xlu0 %v511, 32
    %v514 = vpop.permute.xlu0 %513
    %v516 = vadd.f32 %v506, %v514
    %v517 = vtanh.pop %v516
    %519 = vrot.lane.b32.xlu0 %v517, 64
    %v520 = vpop.permute.xlu0 %519
    %v522 = vmul.f32 %v503, %v520
    %524 = vrot.lane.b32.xlu0 %v522, 32
    %v525 = vpop.permute.xlu0 %524
    %527 = vst.msk [vmem:[#allocation2 + $0x20] sm:$0xff] %vm192, %v525
    %v528 = vsel %vm192, %v525, 0
    %530 = vmatpush.msra.mxu0 0.0
    %531 = vmatpush.msra.mxu0 0.0
    %532 = vmatpush.msra.mxu0 0.0
    %533 = vmatpush.msra.mxu0 0.0
    %534 = vmatpush.msra.mxu0 0.0
    %535 = vmatpush.msra.mxu0 0.0
    %536 = vmatpush.msra.mxu0 0.0
    %537 = vmatpush.msra.mxu0 0.0
    %538 = vmatpush.msra.mxu0 0.0
    %539 = vmatpush.msra.mxu0 0.0
    %540 = vmatpush.msra.mxu0 0.0
    %541 = vmatpush.msra.mxu0 0.0
    %542 = vmatpush.msra.mxu0 %v189
    %543 = vmatpush.msra.mxu0 %v188
    %544 = vmatpush.msra.mxu0 %v187
    %545 = vmatpush.msra.mxu0 %v186
    %546 = vmatmul.f32.gmra.mxu0 %v528
    %v547 = vpop.f32.mrf.mxu0
    %v548 = vadd.f32 0.0, %v547
    %549 = vdwg.mxu0
    %v550 = vadd.f32 %v178, %v548
    %v551 = vxor.u32 %v550, 2147483648
    %v552 = vmul.f32 %v551, 1.442695
    %v553 = vpow.pop %v552
    %v554 = vadd.f32 %v553, 1.0
    %v555 = vrcp.pop %v554
    %v556 = vmul.f32 %v554, %v555
    %v557 = vsub.f32 1.0, %v556
    %v558 = vmul.f32 %v555, %v557
    %v559 = vadd.f32 %v555, %v558
    %vm560 = vweird.f32 %v554
    %vm561 = vweird.f32 %v555
    %vm562 = vmor %vm560, %vm561
    %v563 = vsel %vm562, %v555, %v559
    %v564 = vand.u32 2147483647, %v554
    %vm565 = vcmp.eq.f32.partialorder %v564, 8.507059e+37
    %v566 = vand.u32 %v554, 2147483648
    %v567 = vor.u32 1.1754944e-38, %v566
    %v568 = vsel %vm565, %v567, %v563
    %v569 = vmul.f32 1.0, %v568
    %v570 = vmul.f32 %v569, 2.0
    %v571 = vsub.f32 %v570, 1.0
    %v572 = vmul.f32 %v569, %v516
    %574 = vrot.lane.b32.xlu0 %v571, 64
    %v575 = vpop.permute.xlu0 %574
    %v577 = vmul.f32 %v569, %v575
    %579 = vrot.lane.b32.xlu0 %v577, 32
    %v580 = vpop.permute.xlu0 %579
    %v582 = vadd.f32 %v572, %v580
    %v583 = vtanh.pop %v582
    %585 = vrot.lane.b32.xlu0 %v583, 64
    %v586 = vpop.permute.xlu0 %585
    %v588 = vmul.f32 %v569, %v586
    %590 = vrot.lane.b32.xlu0 %v588, 32
    %v591 = vpop.permute.xlu0 %590
    %593 = vst.msk [vmem:[#allocation2 + $0x28] sm:$0xff] %vm192, %v591
    %v594 = vsel %vm192, %v591, 0
    %596 = vmatpush.msra.mxu0 0.0
    %597 = vmatpush.msra.mxu0 0.0
    %598 = vmatpush.msra.mxu0 0.0
    %599 = vmatpush.msra.mxu0 0.0
    %600 = vmatpush.msra.mxu0 0.0
    %601 = vmatpush.msra.mxu0 0.0
    %602 = vmatpush.msra.mxu0 0.0
    %603 = vmatpush.msra.mxu0 0.0
    %604 = vmatpush.msra.mxu0 0.0
    %605 = vmatpush.msra.mxu0 0.0
    %606 = vmatpush.msra.mxu0 0.0
    %607 = vmatpush.msra.mxu0 0.0
    %608 = vmatpush.msra.mxu0 %v189
    %609 = vmatpush.msra.mxu0 %v188
    %610 = vmatpush.msra.mxu0 %v187
    %611 = vmatpush.msra.mxu0 %v186
    %612 = vmatmul.f32.gmra.mxu0 %v594
    %v613 = vpop.f32.mrf.mxu0
    %v614 = vadd.f32 0.0, %v613
    %615 = vdwg.mxu0
    %v616 = vadd.f32 %v181, %v614
    %v617 = vxor.u32 %v616, 2147483648
    %v618 = vmul.f32 %v617, 1.442695
    %v619 = vpow.pop %v618
    %v620 = vadd.f32 %v619, 1.0
    %v621 = vrcp.pop %v620
    %v622 = vmul.f32 %v620, %v621
    %v623 = vsub.f32 1.0, %v622
    %v624 = vmul.f32 %v621, %v623
    %v625 = vadd.f32 %v621, %v624
    %vm626 = vweird.f32 %v620
    %vm627 = vweird.f32 %v621
    %vm628 = vmor %vm626, %vm627
    %v629 = vsel %vm628, %v621, %v625
    %v630 = vand.u32 2147483647, %v620
    %vm631 = vcmp.eq.f32.partialorder %v630, 8.507059e+37
    %v632 = vand.u32 %v620, 2147483648
    %v633 = vor.u32 1.1754944e-38, %v632
    %v634 = vsel %vm631, %v633, %v629
    %v635 = vmul.f32 1.0, %v634
    %v636 = vmul.f32 %v635, 2.0
    %v637 = vsub.f32 %v636, 1.0
    %v638 = vmul.f32 %v635, %v582
    %640 = vrot.lane.b32.xlu0 %v637, 64
    %v641 = vpop.permute.xlu0 %640
    %v643 = vmul.f32 %v635, %v641
    %645 = vrot.lane.b32.xlu0 %v643, 32
    %v646 = vpop.permute.xlu0 %645
    %v648 = vadd.f32 %v638, %v646
    %v649 = vtanh.pop %v648
    %651 = vrot.lane.b32.xlu0 %v649, 64
    %v652 = vpop.permute.xlu0 %651
    %v654 = vmul.f32 %v635, %v652
    %656 = vrot.lane.b32.xlu0 %v654, 32
    %v657 = vpop.permute.xlu0 %656
    %659 = vst.msk [vmem:[#allocation2 + $0x30] sm:$0xff] %vm192, %v657
    %v660 = vsel %vm192, %v657, 0
    %662 = vmatpush.msra.mxu0 0.0
    %663 = vmatpush.msra.mxu0 0.0
    %664 = vmatpush.msra.mxu0 0.0
    %665 = vmatpush.msra.mxu0 0.0
    %666 = vmatpush.msra.mxu0 0.0
    %667 = vmatpush.msra.mxu0 0.0
    %668 = vmatpush.msra.mxu0 0.0
    %669 = vmatpush.msra.mxu0 0.0
    %670 = vmatpush.msra.mxu0 0.0
    %671 = vmatpush.msra.mxu0 0.0
    %672 = vmatpush.msra.mxu0 0.0
    %673 = vmatpush.msra.mxu0 0.0
    %674 = vmatpush.msra.mxu0 %v189
    %675 = vmatpush.msra.mxu0 %v188
    %676 = vmatpush.msra.mxu0 %v187
    %677 = vmatpush.msra.mxu0 %v186
    %678 = vmatmul.f32.gmra.mxu0 %v660
    %v679 = vpop.f32.mrf.mxu0
    %v680 = vadd.f32 0.0, %v679
    %681 = vdwg.mxu0
    %v682 = vadd.f32 %v184, %v680
    %v683 = vxor.u32 %v682, 2147483648
    %v684 = vmul.f32 %v683, 1.442695
    %v685 = vpow.pop %v684
    %v686 = vadd.f32 %v685, 1.0
    %v687 = vrcp.pop %v686
    %v688 = vmul.f32 %v686, %v687
    %v689 = vsub.f32 1.0, %v688
    %v690 = vmul.f32 %v687, %v689
    %v691 = vadd.f32 %v687, %v690
    %vm692 = vweird.f32 %v686
    %vm693 = vweird.f32 %v687
    %vm694 = vmor %vm692, %vm693
    %v695 = vsel %vm694, %v687, %v691
    %v696 = vand.u32 2147483647, %v686
    %vm697 = vcmp.eq.f32.partialorder %v696, 8.507059e+37
    %v698 = vand.u32 %v686, 2147483648
    %v699 = vor.u32 1.1754944e-38, %v698
    %v700 = vsel %vm697, %v699, %v695
    %v701 = vmul.f32 1.0, %v700
    %v702 = vmul.f32 %v701, 2.0
    %v703 = vsub.f32 %v702, 1.0
    %v704 = vmul.f32 %v701, %v648
    %706 = vrot.lane.b32.xlu0 %v703, 64
    %v707 = vpop.permute.xlu0 %706
    %v709 = vmul.f32 %v701, %v707
    %711 = vrot.lane.b32.xlu0 %v709, 32
    %v712 = vpop.permute.xlu0 %711
    %v714 = vadd.f32 %v704, %v712
    %v715 = vtanh.pop %v714
    %717 = vrot.lane.b32.xlu0 %v715, 64
    %v718 = vpop.permute.xlu0 %717
    %v720 = vmul.f32 %v701, %v718
    %722 = vrot.lane.b32.xlu0 %v720, 32
    %v723 = vpop.permute.xlu0 %722
    %725 = vst.msk [vmem:[#allocation2 + $0x38] sm:$0xff] %vm192, %v723
    %726 = vst.msk [vmem:[#allocation12] sm:$0xff] %vm192, %v723
    %728 = vrot.lane.b32.xlu0 %v714, 96
    %v729 = vpop.permute.xlu0 %728
    %731 = vst.msk [vmem:[#allocation14] sm:$0xff] %vm192, %v729
    %v732 = vld [vmem:[#allocation2] sm:$0xff]
    %v733 = vld [vmem:[#allocation2 + $0x8] sm:$0xff]
    %v734 = vld [vmem:[#allocation2 + $0x10] sm:$0xff]
    %v735 = vld [vmem:[#allocation2 + $0x18] sm:$0xff]
    %v736 = vld [vmem:[#allocation2 + $0x20] sm:$0xff]
    %v737 = vld [vmem:[#allocation2 + $0x28] sm:$0xff]
    %v738 = vld [vmem:[#allocation2 + $0x30] sm:$0xff]
    %v739 = vld [vmem:[#allocation2 + $0x38] sm:$0xff]
    %v740 = vld [vmem:[%s6] sm:$0xff]
    %v741 = vld [vmem:[%s6 + $0x8] sm:$0xff]
    %v742 = vld [vmem:[%s6 + $0x10] sm:$0xff]
    %v743 = vld [vmem:[%s6 + $0x18] sm:$0xff]
    %v744 = vld [vmem:[%s8] sm:$0x1]
    %v746 = vperm.slane %v744, 0
    %v749 = vsel %vm192, %v732, 0
    %v752 = vsel %vm192, %v733, 0
    %v755 = vsel %vm192, %v734, 0
    %v758 = vsel %vm192, %v735, 0
    %v761 = vsel %vm192, %v736, 0
    %v764 = vsel %vm192, %v737, 0
    %v767 = vsel %vm192, %v738, 0
    %v770 = vsel %vm192, %v739, 0
    %772 = vmatpush.msra.mxu0 0.0
    %773 = vmatpush.msra.mxu0 0.0
    %774 = vmatpush.msra.mxu0 0.0
    %775 = vmatpush.msra.mxu0 0.0
    %776 = vmatpush.msra.mxu0 0.0
    %777 = vmatpush.msra.mxu0 0.0
    %778 = vmatpush.msra.mxu0 0.0
    %779 = vmatpush.msra.mxu0 0.0
    %780 = vmatpush.msra.mxu0 0.0
    %781 = vmatpush.msra.mxu0 0.0
    %782 = vmatpush.msra.mxu0 0.0
    %783 = vmatpush.msra.mxu0 0.0
    %784 = vmatpush.msra.mxu0 %v743
    %785 = vmatpush.msra.mxu0 %v742
    %786 = vmatpush.msra.mxu0 %v741
    %787 = vmatpush.msra.mxu0 %v740
    %788 = vmatmul.f32.gmra.mxu0 %v749
    %v789 = vpop.f32.mrf.mxu0
    %v790 = vadd.f32 %v746, %v789
    %791 = vmatmul.f32.gmra.mxu0 %v752
    %v792 = vpop.f32.mrf.mxu0
    %v793 = vadd.f32 %v746, %v792
    %794 = vmatmul.f32.gmra.mxu0 %v755
    %v795 = vpop.f32.mrf.mxu0
    %v796 = vadd.f32 %v746, %v795
    %797 = vmatmul.f32.gmra.mxu0 %v758
    %v798 = vpop.f32.mrf.mxu0
    %v799 = vadd.f32 %v746, %v798
    %800 = vmatmul.f32.gmra.mxu0 %v761
    %v801 = vpop.f32.mrf.mxu0
    %v802 = vadd.f32 %v746, %v801
    %803 = vmatmul.f32.gmra.mxu0 %v764
    %v804 = vpop.f32.mrf.mxu0
    %v805 = vadd.f32 %v746, %v804
    %806 = vmatmul.f32.gmra.mxu0 %v767
    %v807 = vpop.f32.mrf.mxu0
    %v808 = vadd.f32 %v746, %v807
    %809 = vmatmul.f32.gmra.mxu0 %v770
    %v810 = vpop.f32.mrf.mxu0
    %v811 = vadd.f32 %v746, %v810
    %812 = vdwg.mxu0
    %v813 = vld [vmem:[#allocation8] sm:$0xff]
    %v814 = vld [vmem:[#allocation8 + $0x8] sm:$0xff]
    %v815 = vld [vmem:[#allocation8 + $0x10] sm:$0xff]
    %v816 = vld [vmem:[#allocation8 + $0x18] sm:$0xff]
    %s817 = scalar_lea.vmem %s1, 8
    %v818 = vld [vmem:[%s817] sm:$0xff]
    %s819 = scalar_lea.vmem [#allocation3], 8
    %v820 = vld [vmem:[%s819] sm:$0xff]
    %v822 = vsel %vm192, %v818, 0
    %824 = vmatpush.msra.mxu0 0.0
    %825 = vmatpush.msra.mxu0 0.0
    %826 = vmatpush.msra.mxu0 0.0
    %827 = vmatpush.msra.mxu0 0.0
    %828 = vmatpush.msra.mxu0 0.0
    %829 = vmatpush.msra.mxu0 0.0
    %830 = vmatpush.msra.mxu0 0.0
    %831 = vmatpush.msra.mxu0 0.0
    %832 = vmatpush.msra.mxu0 0.0
    %833 = vmatpush.msra.mxu0 0.0
    %834 = vmatpush.msra.mxu0 0.0
    %835 = vmatpush.msra.mxu0 0.0
    %836 = vmatpush.msra.mxu0 %v816
    %837 = vmatpush.msra.mxu0 %v815
    %838 = vmatpush.msra.mxu0 %v814
    %839 = vmatpush.msra.mxu0 %v813
    %840 = vmatmul.f32.gmra.mxu0 %v822
    %v841 = vpop.f32.mrf.mxu0
    %v842 = vadd.f32 0.0, %v841
    %843 = vdwg.mxu0
    %v844 = vadd.f32 %v790, %v842
    %v845 = vxor.u32 %v844, 2147483648
    %v846 = vmul.f32 %v845, 1.442695
    %v847 = vpow.pop %v846
    %v848 = vadd.f32 %v847, 1.0
    %v849 = vrcp.pop %v848
    %v850 = vmul.f32 %v848, %v849
    %v851 = vsub.f32 1.0, %v850
    %v852 = vmul.f32 %v849, %v851
    %v853 = vadd.f32 %v849, %v852
    %vm854 = vweird.f32 %v848
    %vm855 = vweird.f32 %v849
    %vm856 = vmor %vm854, %vm855
    %v857 = vsel %vm856, %v849, %v853
    %v858 = vand.u32 2147483647, %v848
    %vm859 = vcmp.eq.f32.partialorder %v858, 8.507059e+37
    %v860 = vand.u32 %v848, 2147483648
    %v861 = vor.u32 1.1754944e-38, %v860
    %v862 = vsel %vm859, %v861, %v857
    %v863 = vmul.f32 1.0, %v862
    %v864 = vmul.f32 %v863, 2.0
    %v865 = vsub.f32 %v864, 1.0
    %867 = vrot.lane.b32.xlu0 %v820, 32
    %v868 = vpop.permute.xlu0 %867
    %v870 = vmul.f32 %v863, %v868
    %872 = vrot.lane.b32.xlu0 %v865, 64
    %v873 = vpop.permute.xlu0 %872
    %v875 = vmul.f32 %v863, %v873
    %877 = vrot.lane.b32.xlu0 %v875, 32
    %v878 = vpop.permute.xlu0 %877
    %v880 = vadd.f32 %v870, %v878
    %v881 = vtanh.pop %v880
    %883 = vrot.lane.b32.xlu0 %v881, 64
    %v884 = vpop.permute.xlu0 %883
    %v886 = vmul.f32 %v863, %v884
    %888 = vrot.lane.b32.xlu0 %v886, 32
    %v889 = vpop.permute.xlu0 %888
    %v890 = vsel %vm192, %v889, 0
    %892 = vmatpush.msra.mxu0 0.0
    %893 = vmatpush.msra.mxu0 0.0
    %894 = vmatpush.msra.mxu0 0.0
    %895 = vmatpush.msra.mxu0 0.0
    %896 = vmatpush.msra.mxu0 0.0
    %897 = vmatpush.msra.mxu0 0.0
    %898 = vmatpush.msra.mxu0 0.0
    %899 = vmatpush.msra.mxu0 0.0
    %900 = vmatpush.msra.mxu0 0.0
    %901 = vmatpush.msra.mxu0 0.0
    %902 = vmatpush.msra.mxu0 0.0
    %903 = vmatpush.msra.mxu0 0.0
    %904 = vmatpush.msra.mxu0 %v816
    %905 = vmatpush.msra.mxu0 %v815
    %906 = vmatpush.msra.mxu0 %v814
    %907 = vmatpush.msra.mxu0 %v813
    %908 = vmatmul.f32.gmra.mxu0 %v890
    %v909 = vpop.f32.mrf.mxu0
    %v910 = vadd.f32 0.0, %v909
    %911 = vdwg.mxu0
    %v912 = vadd.f32 %v793, %v910
    %v913 = vxor.u32 %v912, 2147483648
    %v914 = vmul.f32 %v913, 1.442695
    %v915 = vpow.pop %v914
    %v916 = vadd.f32 %v915, 1.0
    %v917 = vrcp.pop %v916
    %v918 = vmul.f32 %v916, %v917
    %v919 = vsub.f32 1.0, %v918
    %v920 = vmul.f32 %v917, %v919
    %v921 = vadd.f32 %v917, %v920
    %vm922 = vweird.f32 %v916
    %vm923 = vweird.f32 %v917
    %vm924 = vmor %vm922, %vm923
    %v925 = vsel %vm924, %v917, %v921
    %v926 = vand.u32 2147483647, %v916
    %vm927 = vcmp.eq.f32.partialorder %v926, 8.507059e+37
    %v928 = vand.u32 %v916, 2147483648
    %v929 = vor.u32 1.1754944e-38, %v928
    %v930 = vsel %vm927, %v929, %v925
    %v931 = vmul.f32 1.0, %v930
    %v932 = vmul.f32 %v931, 2.0
    %v933 = vsub.f32 %v932, 1.0
    %v934 = vmul.f32 %v931, %v880
    %936 = vrot.lane.b32.xlu0 %v933, 64
    %v937 = vpop.permute.xlu0 %936
    %v939 = vmul.f32 %v931, %v937
    %941 = vrot.lane.b32.xlu0 %v939, 32
    %v942 = vpop.permute.xlu0 %941
    %v944 = vadd.f32 %v934, %v942
    %v945 = vtanh.pop %v944
    %947 = vrot.lane.b32.xlu0 %v945, 64
    %v948 = vpop.permute.xlu0 %947
    %v950 = vmul.f32 %v931, %v948
    %952 = vrot.lane.b32.xlu0 %v950, 32
    %v953 = vpop.permute.xlu0 %952
    %v954 = vsel %vm192, %v953, 0
    %956 = vmatpush.msra.mxu0 0.0
    %957 = vmatpush.msra.mxu0 0.0
    %958 = vmatpush.msra.mxu0 0.0
    %959 = vmatpush.msra.mxu0 0.0
    %960 = vmatpush.msra.mxu0 0.0
    %961 = vmatpush.msra.mxu0 0.0
    %962 = vmatpush.msra.mxu0 0.0
    %963 = vmatpush.msra.mxu0 0.0
    %964 = vmatpush.msra.mxu0 0.0
    %965 = vmatpush.msra.mxu0 0.0
    %966 = vmatpush.msra.mxu0 0.0
    %967 = vmatpush.msra.mxu0 0.0
    %968 = vmatpush.msra.mxu0 %v816
    %969 = vmatpush.msra.mxu0 %v815
    %970 = vmatpush.msra.mxu0 %v814
    %971 = vmatpush.msra.mxu0 %v813
    %972 = vmatmul.f32.gmra.mxu0 %v954
    %v973 = vpop.f32.mrf.mxu0
    %v974 = vadd.f32 0.0, %v973
    %975 = vdwg.mxu0
    %v976 = vadd.f32 %v796, %v974
    %v977 = vxor.u32 %v976, 2147483648
    %v978 = vmul.f32 %v977, 1.442695
    %v979 = vpow.pop %v978
    %v980 = vadd.f32 %v979, 1.0
    %v981 = vrcp.pop %v980
    %v982 = vmul.f32 %v980, %v981
    %v983 = vsub.f32 1.0, %v982
    %v984 = vmul.f32 %v981, %v983
    %v985 = vadd.f32 %v981, %v984
    %vm986 = vweird.f32 %v980
    %vm987 = vweird.f32 %v981
    %vm988 = vmor %vm986, %vm987
    %v989 = vsel %vm988, %v981, %v985
    %v990 = vand.u32 2147483647, %v980
    %vm991 = vcmp.eq.f32.partialorder %v990, 8.507059e+37
    %v992 = vand.u32 %v980, 2147483648
    %v993 = vor.u32 1.1754944e-38, %v992
    %v994 = vsel %vm991, %v993, %v989
    %v995 = vmul.f32 1.0, %v994
    %v996 = vmul.f32 %v995, 2.0
    %v997 = vsub.f32 %v996, 1.0
    %v998 = vmul.f32 %v995, %v944
    %1000 = vrot.lane.b32.xlu0 %v997, 64
    %v1001 = vpop.permute.xlu0 %1000
    %v1003 = vmul.f32 %v995, %v1001
    %1005 = vrot.lane.b32.xlu0 %v1003, 32
    %v1006 = vpop.permute.xlu0 %1005
    %v1008 = vadd.f32 %v998, %v1006
    %v1009 = vtanh.pop %v1008
    %1011 = vrot.lane.b32.xlu0 %v1009, 64
    %v1012 = vpop.permute.xlu0 %1011
    %v1014 = vmul.f32 %v995, %v1012
    %1016 = vrot.lane.b32.xlu0 %v1014, 32
    %v1017 = vpop.permute.xlu0 %1016
    %v1018 = vsel %vm192, %v1017, 0
    %1020 = vmatpush.msra.mxu0 0.0
    %1021 = vmatpush.msra.mxu0 0.0
    %1022 = vmatpush.msra.mxu0 0.0
    %1023 = vmatpush.msra.mxu0 0.0
    %1024 = vmatpush.msra.mxu0 0.0
    %1025 = vmatpush.msra.mxu0 0.0
    %1026 = vmatpush.msra.mxu0 0.0
    %1027 = vmatpush.msra.mxu0 0.0
    %1028 = vmatpush.msra.mxu0 0.0
    %1029 = vmatpush.msra.mxu0 0.0
    %1030 = vmatpush.msra.mxu0 0.0
    %1031 = vmatpush.msra.mxu0 0.0
    %1032 = vmatpush.msra.mxu0 %v816
    %1033 = vmatpush.msra.mxu0 %v815
    %1034 = vmatpush.msra.mxu0 %v814
    %1035 = vmatpush.msra.mxu0 %v813
    %1036 = vmatmul.f32.gmra.mxu0 %v1018
    %v1037 = vpop.f32.mrf.mxu0
    %v1038 = vadd.f32 0.0, %v1037
    %1039 = vdwg.mxu0
    %v1040 = vadd.f32 %v799, %v1038
    %v1041 = vxor.u32 %v1040, 2147483648
    %v1042 = vmul.f32 %v1041, 1.442695
    %v1043 = vpow.pop %v1042
    %v1044 = vadd.f32 %v1043, 1.0
    %v1045 = vrcp.pop %v1044
    %v1046 = vmul.f32 %v1044, %v1045
    %v1047 = vsub.f32 1.0, %v1046
    %v1048 = vmul.f32 %v1045, %v1047
    %v1049 = vadd.f32 %v1045, %v1048
    %vm1050 = vweird.f32 %v1044
    %vm1051 = vweird.f32 %v1045
    %vm1052 = vmor %vm1050, %vm1051
    %v1053 = vsel %vm1052, %v1045, %v1049
    %v1054 = vand.u32 2147483647, %v1044
    %vm1055 = vcmp.eq.f32.partialorder %v1054, 8.507059e+37
    %v1056 = vand.u32 %v1044, 2147483648
    %v1057 = vor.u32 1.1754944e-38, %v1056
    %v1058 = vsel %vm1055, %v1057, %v1053
    %v1059 = vmul.f32 1.0, %v1058
    %v1060 = vmul.f32 %v1059, 2.0
    %v1061 = vsub.f32 %v1060, 1.0
    %v1062 = vmul.f32 %v1059, %v1008
    %1064 = vrot.lane.b32.xlu0 %v1061, 64
    %v1065 = vpop.permute.xlu0 %1064
    %v1067 = vmul.f32 %v1059, %v1065
    %1069 = vrot.lane.b32.xlu0 %v1067, 32
    %v1070 = vpop.permute.xlu0 %1069
    %v1072 = vadd.f32 %v1062, %v1070
    %v1073 = vtanh.pop %v1072
    %1075 = vrot.lane.b32.xlu0 %v1073, 64
    %v1076 = vpop.permute.xlu0 %1075
    %v1078 = vmul.f32 %v1059, %v1076
    %1080 = vrot.lane.b32.xlu0 %v1078, 32
    %v1081 = vpop.permute.xlu0 %1080
    %v1082 = vsel %vm192, %v1081, 0
    %1084 = vmatpush.msra.mxu0 0.0
    %1085 = vmatpush.msra.mxu0 0.0
    %1086 = vmatpush.msra.mxu0 0.0
    %1087 = vmatpush.msra.mxu0 0.0
    %1088 = vmatpush.msra.mxu0 0.0
    %1089 = vmatpush.msra.mxu0 0.0
    %1090 = vmatpush.msra.mxu0 0.0
    %1091 = vmatpush.msra.mxu0 0.0
    %1092 = vmatpush.msra.mxu0 0.0
    %1093 = vmatpush.msra.mxu0 0.0
    %1094 = vmatpush.msra.mxu0 0.0
    %1095 = vmatpush.msra.mxu0 0.0
    %1096 = vmatpush.msra.mxu0 %v816
    %1097 = vmatpush.msra.mxu0 %v815
    %1098 = vmatpush.msra.mxu0 %v814
    %1099 = vmatpush.msra.mxu0 %v813
    %1100 = vmatmul.f32.gmra.mxu0 %v1082
    %v1101 = vpop.f32.mrf.mxu0
    %v1102 = vadd.f32 0.0, %v1101
    %1103 = vdwg.mxu0
    %v1104 = vadd.f32 %v802, %v1102
    %v1105 = vxor.u32 %v1104, 2147483648
    %v1106 = vmul.f32 %v1105, 1.442695
    %v1107 = vpow.pop %v1106
    %v1108 = vadd.f32 %v1107, 1.0
    %v1109 = vrcp.pop %v1108
    %v1110 = vmul.f32 %v1108, %v1109
    %v1111 = vsub.f32 1.0, %v1110
    %v1112 = vmul.f32 %v1109, %v1111
    %v1113 = vadd.f32 %v1109, %v1112
    %vm1114 = vweird.f32 %v1108
    %vm1115 = vweird.f32 %v1109
    %vm1116 = vmor %vm1114, %vm1115
    %v1117 = vsel %vm1116, %v1109, %v1113
    %v1118 = vand.u32 2147483647, %v1108
    %vm1119 = vcmp.eq.f32.partialorder %v1118, 8.507059e+37
    %v1120 = vand.u32 %v1108, 2147483648
    %v1121 = vor.u32 1.1754944e-38, %v1120
    %v1122 = vsel %vm1119, %v1121, %v1117
    %v1123 = vmul.f32 1.0, %v1122
    %v1124 = vmul.f32 %v1123, 2.0
    %v1125 = vsub.f32 %v1124, 1.0
    %v1126 = vmul.f32 %v1123, %v1072
    %1128 = vrot.lane.b32.xlu0 %v1125, 64
    %v1129 = vpop.permute.xlu0 %1128
    %v1131 = vmul.f32 %v1123, %v1129
    %1133 = vrot.lane.b32.xlu0 %v1131, 32
    %v1134 = vpop.permute.xlu0 %1133
    %v1136 = vadd.f32 %v1126, %v1134
    %v1137 = vtanh.pop %v1136
    %1139 = vrot.lane.b32.xlu0 %v1137, 64
    %v1140 = vpop.permute.xlu0 %1139
    %v1142 = vmul.f32 %v1123, %v1140
    %1144 = vrot.lane.b32.xlu0 %v1142, 32
    %v1145 = vpop.permute.xlu0 %1144
    %v1146 = vsel %vm192, %v1145, 0
    %1148 = vmatpush.msra.mxu0 0.0
    %1149 = vmatpush.msra.mxu0 0.0
    %1150 = vmatpush.msra.mxu0 0.0
    %1151 = vmatpush.msra.mxu0 0.0
    %1152 = vmatpush.msra.mxu0 0.0
    %1153 = vmatpush.msra.mxu0 0.0
    %1154 = vmatpush.msra.mxu0 0.0
    %1155 = vmatpush.msra.mxu0 0.0
    %1156 = vmatpush.msra.mxu0 0.0
    %1157 = vmatpush.msra.mxu0 0.0
    %1158 = vmatpush.msra.mxu0 0.0
    %1159 = vmatpush.msra.mxu0 0.0
    %1160 = vmatpush.msra.mxu0 %v816
    %1161 = vmatpush.msra.mxu0 %v815
    %1162 = vmatpush.msra.mxu0 %v814
    %1163 = vmatpush.msra.mxu0 %v813
    %1164 = vmatmul.f32.gmra.mxu0 %v1146
    %v1165 = vpop.f32.mrf.mxu0
    %v1166 = vadd.f32 0.0, %v1165
    %1167 = vdwg.mxu0
    %v1168 = vadd.f32 %v805, %v1166
    %v1169 = vxor.u32 %v1168, 2147483648
    %v1170 = vmul.f32 %v1169, 1.442695
    %v1171 = vpow.pop %v1170
    %v1172 = vadd.f32 %v1171, 1.0
    %v1173 = vrcp.pop %v1172
    %v1174 = vmul.f32 %v1172, %v1173
    %v1175 = vsub.f32 1.0, %v1174
    %v1176 = vmul.f32 %v1173, %v1175
    %v1177 = vadd.f32 %v1173, %v1176
    %vm1178 = vweird.f32 %v1172
    %vm1179 = vweird.f32 %v1173
    %vm1180 = vmor %vm1178, %vm1179
    %v1181 = vsel %vm1180, %v1173, %v1177
    %v1182 = vand.u32 2147483647, %v1172
    %vm1183 = vcmp.eq.f32.partialorder %v1182, 8.507059e+37
    %v1184 = vand.u32 %v1172, 2147483648
    %v1185 = vor.u32 1.1754944e-38, %v1184
    %v1186 = vsel %vm1183, %v1185, %v1181
    %v1187 = vmul.f32 1.0, %v1186
    %v1188 = vmul.f32 %v1187, 2.0
    %v1189 = vsub.f32 %v1188, 1.0
    %v1190 = vmul.f32 %v1187, %v1136
    %1192 = vrot.lane.b32.xlu0 %v1189, 64
    %v1193 = vpop.permute.xlu0 %1192
    %v1195 = vmul.f32 %v1187, %v1193
    %1197 = vrot.lane.b32.xlu0 %v1195, 32
    %v1198 = vpop.permute.xlu0 %1197
    %v1200 = vadd.f32 %v1190, %v1198
    %v1201 = vtanh.pop %v1200
    %1203 = vrot.lane.b32.xlu0 %v1201, 64
    %v1204 = vpop.permute.xlu0 %1203
    %v1206 = vmul.f32 %v1187, %v1204
    %1208 = vrot.lane.b32.xlu0 %v1206, 32
    %v1209 = vpop.permute.xlu0 %1208
    %v1210 = vsel %vm192, %v1209, 0
    %1212 = vmatpush.msra.mxu0 0.0
    %1213 = vmatpush.msra.mxu0 0.0
    %1214 = vmatpush.msra.mxu0 0.0
    %1215 = vmatpush.msra.mxu0 0.0
    %1216 = vmatpush.msra.mxu0 0.0
    %1217 = vmatpush.msra.mxu0 0.0
    %1218 = vmatpush.msra.mxu0 0.0
    %1219 = vmatpush.msra.mxu0 0.0
    %1220 = vmatpush.msra.mxu0 0.0
    %1221 = vmatpush.msra.mxu0 0.0
    %1222 = vmatpush.msra.mxu0 0.0
    %1223 = vmatpush.msra.mxu0 0.0
    %1224 = vmatpush.msra.mxu0 %v816
    %1225 = vmatpush.msra.mxu0 %v815
    %1226 = vmatpush.msra.mxu0 %v814
    %1227 = vmatpush.msra.mxu0 %v813
    %1228 = vmatmul.f32.gmra.mxu0 %v1210
    %v1229 = vpop.f32.mrf.mxu0
    %v1230 = vadd.f32 0.0, %v1229
    %1231 = vdwg.mxu0
    %v1232 = vadd.f32 %v808, %v1230
    %v1233 = vxor.u32 %v1232, 2147483648
    %v1234 = vmul.f32 %v1233, 1.442695
    %v1235 = vpow.pop %v1234
    %v1236 = vadd.f32 %v1235, 1.0
    %v1237 = vrcp.pop %v1236
    %v1238 = vmul.f32 %v1236, %v1237
    %v1239 = vsub.f32 1.0, %v1238
    %v1240 = vmul.f32 %v1237, %v1239
    %v1241 = vadd.f32 %v1237, %v1240
    %vm1242 = vweird.f32 %v1236
    %vm1243 = vweird.f32 %v1237
    %vm1244 = vmor %vm1242, %vm1243
    %v1245 = vsel %vm1244, %v1237, %v1241
    %v1246 = vand.u32 2147483647, %v1236
    %vm1247 = vcmp.eq.f32.partialorder %v1246, 8.507059e+37
    %v1248 = vand.u32 %v1236, 2147483648
    %v1249 = vor.u32 1.1754944e-38, %v1248
    %v1250 = vsel %vm1247, %v1249, %v1245
    %v1251 = vmul.f32 1.0, %v1250
    %v1252 = vmul.f32 %v1251, 2.0
    %v1253 = vsub.f32 %v1252, 1.0
    %v1254 = vmul.f32 %v1251, %v1200
    %1256 = vrot.lane.b32.xlu0 %v1253, 64
    %v1257 = vpop.permute.xlu0 %1256
    %v1259 = vmul.f32 %v1251, %v1257
    %1261 = vrot.lane.b32.xlu0 %v1259, 32
    %v1262 = vpop.permute.xlu0 %1261
    %v1264 = vadd.f32 %v1254, %v1262
    %v1265 = vtanh.pop %v1264
    %1267 = vrot.lane.b32.xlu0 %v1265, 64
    %v1268 = vpop.permute.xlu0 %1267
    %v1270 = vmul.f32 %v1251, %v1268
    %1272 = vrot.lane.b32.xlu0 %v1270, 32
    %v1273 = vpop.permute.xlu0 %1272
    %v1274 = vsel %vm192, %v1273, 0
    %1276 = vmatpush.msra.mxu0 0.0
    %1277 = vmatpush.msra.mxu0 0.0
    %1278 = vmatpush.msra.mxu0 0.0
    %1279 = vmatpush.msra.mxu0 0.0
    %1280 = vmatpush.msra.mxu0 0.0
    %1281 = vmatpush.msra.mxu0 0.0
    %1282 = vmatpush.msra.mxu0 0.0
    %1283 = vmatpush.msra.mxu0 0.0
    %1284 = vmatpush.msra.mxu0 0.0
    %1285 = vmatpush.msra.mxu0 0.0
    %1286 = vmatpush.msra.mxu0 0.0
    %1287 = vmatpush.msra.mxu0 0.0
    %1288 = vmatpush.msra.mxu0 %v816
    %1289 = vmatpush.msra.mxu0 %v815
    %1290 = vmatpush.msra.mxu0 %v814
    %1291 = vmatpush.msra.mxu0 %v813
    %1292 = vmatmul.f32.gmra.mxu0 %v1274
    %v1293 = vpop.f32.mrf.mxu0
    %v1294 = vadd.f32 0.0, %v1293
    %1295 = vdwg.mxu0
    %v1296 = vadd.f32 %v811, %v1294
    %v1297 = vxor.u32 %v1296, 2147483648
    %v1298 = vmul.f32 %v1297, 1.442695
    %v1299 = vpow.pop %v1298
    %v1300 = vadd.f32 %v1299, 1.0
    %v1301 = vrcp.pop %v1300
    %v1302 = vmul.f32 %v1300, %v1301
    %v1303 = vsub.f32 1.0, %v1302
    %v1304 = vmul.f32 %v1301, %v1303
    %v1305 = vadd.f32 %v1301, %v1304
    %vm1306 = vweird.f32 %v1300
    %vm1307 = vweird.f32 %v1301
    %vm1308 = vmor %vm1306, %vm1307
    %v1309 = vsel %vm1308, %v1301, %v1305
    %v1310 = vand.u32 2147483647, %v1300
    %vm1311 = vcmp.eq.f32.partialorder %v1310, 8.507059e+37
    %v1312 = vand.u32 %v1300, 2147483648
    %v1313 = vor.u32 1.1754944e-38, %v1312
    %v1314 = vsel %vm1311, %v1313, %v1309
    %v1315 = vmul.f32 1.0, %v1314
    %v1316 = vmul.f32 %v1315, 2.0
    %v1317 = vsub.f32 %v1316, 1.0
    %v1318 = vmul.f32 %v1315, %v1264
    %1320 = vrot.lane.b32.xlu0 %v1317, 64
    %v1321 = vpop.permute.xlu0 %1320
    %v1323 = vmul.f32 %v1315, %v1321
    %1325 = vrot.lane.b32.xlu0 %v1323, 32
    %v1326 = vpop.permute.xlu0 %1325
    %v1328 = vadd.f32 %v1318, %v1326
    %v1329 = vtanh.pop %v1328
    %1331 = vrot.lane.b32.xlu0 %v1329, 64
    %v1332 = vpop.permute.xlu0 %1331
    %v1334 = vmul.f32 %v1315, %v1332
    %1336 = vrot.lane.b32.xlu0 %v1334, 32
    %v1337 = vpop.permute.xlu0 %1336
    %s1339 = scalar_lea.vmem [#allocation12], 8
    %1340 = vst.msk [vmem:[%s1339] sm:$0xff] %vm192, %v1337
    %1342 = vrot.lane.b32.xlu0 %v1328, 96
    %v1343 = vpop.permute.xlu0 %1342
    %s1345 = scalar_lea.vmem [#allocation14], 8
    %1346 = vst.msk [vmem:[%s1345] sm:$0xff] %vm192, %v1343
    %v1347 = vld [vmem:[#allocation9] sm:$0xff]
    %v1348 = vld [vmem:[#allocation9 + $0x8] sm:$0xff]
    %v1349 = vld [vmem:[#allocation9 + $0x10] sm:$0xff]
    %v1350 = vld [vmem:[#allocation9 + $0x18] sm:$0xff]
    %v1351 = vld [vmem:[%s10] sm:$0x1]
    %v1353 = vperm.slane %v1351, 0
    %v1355 = vsel %vm192, %v1337, 0
    %1357 = vmatpush.msra.mxu0 0.0
    %1358 = vmatpush.msra.mxu0 0.0
    %1359 = vmatpush.msra.mxu0 0.0
    %1360 = vmatpush.msra.mxu0 0.0
    %1361 = vmatpush.msra.mxu0 0.0
    %1362 = vmatpush.msra.mxu0 0.0
    %1363 = vmatpush.msra.mxu0 0.0
    %1364 = vmatpush.msra.mxu0 0.0
    %1365 = vmatpush.msra.mxu0 0.0
    %1366 = vmatpush.msra.mxu0 0.0
    %1367 = vmatpush.msra.mxu0 0.0
    %1368 = vmatpush.msra.mxu0 0.0
    %1369 = vmatpush.msra.mxu0 %v1350
    %1370 = vmatpush.msra.mxu0 %v1349
    %1371 = vmatpush.msra.mxu0 %v1348
    %1372 = vmatpush.msra.mxu0 %v1347
    %1373 = vmatmul.f32.gmra.mxu0 %v1355
    %v1374 = vpop.f32.mrf.mxu0
    %v1375 = vadd.f32 %v1353, %v1374
    %1376 = vdwg.mxu0
    %1377 = vst [vmem:[#allocation11] sm:$0xff] %v1375
    // Predicated region
    $region62: #{tpu_custom_call.1} parent=1 // pred_check
      _
    $region63: #{tpu_custom_call.1} parent=1 // pred_check_branch
      %1379 = sbr.rel (0) target = $region65
    $region64: #{tpu_custom_call.1} parent=1 // pred_region
      %1381 = vsyncadd [#allocation5], 0
      %s1383 = sshll.u32 [#allocation11], 4
      %s1384 = int_to_ptr.vmem [resolvable:$true] %s1383
      %s1385 = sshll.u32 %s11, 4
      %s1386 = int_to_ptr.hbm [resolvable:$true] %s1385
      %1388 = dma.vmem_to_hbm [thread:$0]  %s1384, 128, %s1386, [#allocation5]
    $region65: #{tpu_custom_call.1} parent=1 // pred_fallthru
      _
    // Predicated region
    $region66: #{tpu_custom_call.1} parent=1 // pred_check
      _
    $region67: #{tpu_custom_call.1} parent=1 // pred_check_branch
      %1390 = sbr.rel (0) target = $region69
    $region68: #{tpu_custom_call.1} parent=1 // pred_region
      %1392 = vsyncadd [#allocation13], 0
      %s1393 = sshll.u32 [#allocation12], 4
      %s1394 = int_to_ptr.vmem [resolvable:$true] %s1393
      %s1395 = sshll.u32 %s12, 4
      %s1396 = int_to_ptr.hbm [resolvable:$true] %s1395
      %1401 = dma.vmem_to_hbm [thread:$0]  %s1394, 256, %s1396, [#allocation13], 128, 128, 8
    $region69: #{tpu_custom_call.1} parent=1 // pred_fallthru
      _
    // Predicated region
    $region70: #{tpu_custom_call.1} parent=1 // pred_check
      _
    $region71: #{tpu_custom_call.1} parent=1 // pred_check_branch
      %1403 = sbr.rel (0) target = $region73
    $region72: #{tpu_custom_call.1} parent=1 // pred_region
      %1405 = vsyncadd [#allocation13], 0
      %s1406 = sshll.u32 [#allocation14], 4
      %s1407 = int_to_ptr.vmem [resolvable:$true] %s1406
      %s1408 = sshll.u32 %s13, 4
      %s1409 = int_to_ptr.hbm [resolvable:$true] %s1408
      %1414 = dma.vmem_to_hbm [thread:$0]  %s1407, 256, %s1409, [#allocation13], 128, 128, 8
    $region73: #{tpu_custom_call.1} parent=1 // pred_fallthru
      _
    // Predicated region
    $region74: #{tpu_custom_call.1} parent=1 // pred_check
      _
    $region75: #{tpu_custom_call.1} parent=1 // pred_check_branch
      %1416 = sbr.rel (0) target = $region77
    $region76: #{tpu_custom_call.1} parent=1 // pred_region
      %1418 = dma.done [#allocation5], 128
    $region77: #{tpu_custom_call.1} parent=1 // pred_fallthru
      _
    // Predicated region
    $region78: #{tpu_custom_call.1} parent=1 // pred_check
      _
    $region79: #{tpu_custom_call.1} parent=1 // pred_check_branch
      %1420 = sbr.rel (0) target = $region81
    $region80: #{tpu_custom_call.1} parent=1 // pred_region
      %1422 = dma.done [#allocation13], 256
    $region81: #{tpu_custom_call.1} parent=1 // pred_fallthru
      _
    // Predicated region
    $region82: #{tpu_custom_call.1} parent=1 // pred_check
      _
    $region83: #{tpu_custom_call.1} parent=1 // pred_check_branch
      %1424 = sbr.rel (0) target = $region85
    $region84: #{tpu_custom_call.1} parent=1 // pred_region
      %1426 = dma.done [#allocation13], 256
    $region85: #{tpu_custom_call.1} parent=1 // pred_fallthru
      _
    %1427 = vsyncpa [#allocation4], 1
    %1428 = vsyncpa [#allocation7], 1
    %1429 = vsyncpa [#allocation10], 1
    %1430 = vsyncpa [#allocation5], 1
    %1431 = vsyncpa [#allocation13], 1

</llo_original>
